<compile_context>
chip_gen: v6e
topology: v6e:2x2x1
jax: 0.10.0
libtpu: 0.0.40
codegen_flags: <defaults>
</compile_context>

<pallas_src>
import math
from functools import lru_cache

import numpy as np
import jax
import jax.numpy as jnp
from jax.experimental import pallas as pl
from jax.experimental.pallas import tpu as pltpu


# ---------------------------------------------------------------------------
# Deterministic resampling matrices (no learnable parameters in this module)
# ---------------------------------------------------------------------------
@lru_cache(maxsize=None)
def _adaptive_avg_matrix_np(out_size, in_size):
    """Row-stochastic A (out, in) s.t. A @ v == adaptive_avg_pool1d(v)."""
    A = np.zeros((out_size, in_size), np.float32)
    for o in range(out_size):
        s = (o * in_size) // out_size
        e = -((-(o + 1) * in_size) // out_size)  # ceil((o+1)*in/out)
        A[o, s:e] = 1.0 / (e - s)
    return A


@lru_cache(maxsize=None)
def _bilinear_matrix_np(out_size, in_size):
    """1-D bilinear resize matrix, PyTorch align_corners=False convention."""
    U = np.zeros((out_size, in_size), np.float32)
    scale = in_size / out_size
    for o in range(out_size):
        src = max((o + 0.5) * scale - 0.5, 0.0)
        i0 = min(int(np.floor(src)), in_size - 1)
        i1 = min(i0 + 1, in_size - 1)
        f = src - i0
        U[o, i0] += 1.0 - f
        U[o, i1] += f
    return U


# ---------------------------------------------------------------------------
# Channel-chunk selection (uniform split of every segment's channel dim)
# ---------------------------------------------------------------------------
def _num_chunks(channel_gcd, per_batch_in_bytes, min_step_bytes, max_step_bytes):
    divisors = [d for d in range(1, channel_gcd + 1) if channel_gcd % d == 0]
    n = 1
    for d in sorted(divisors, reverse=True):      # prefer more chunks (deeper pipeline)
        if per_batch_in_bytes // d >= min_step_bytes:
            n = d
            break
    if per_batch_in_bytes // n > max_step_bytes:  # still too big for VMEM budget:
        n = max(divisors)                         # split as far as divisibility allows
    return n


# ---------------------------------------------------------------------------
# SimFusion_4in forward
# ---------------------------------------------------------------------------
def sim_fusion_4in(x, *, min_step_bytes=1 << 20, max_step_bytes=6 << 20):
    x_l, x_m, x_s, x_n = x
    B, C_s_, H, W = x_s.shape
    _, C_l, h_l, w_l = x_l.shape
    _, C_m, h_m, w_m = x_m.shape
    _, C_n, h_n, w_n = x_n.shape
    C_total = C_l + C_m + C_s_ + C_n

    out_dtype = jnp.result_type(x_l.dtype, x_m.dtype, x_s.dtype, x_n.dtype)
    # Keep low-precision float inputs low precision into the MXU (f32 accumulate),
    # otherwise f32 matrices.
    if jnp.issubdtype(out_dtype, jnp.floating) and jnp.dtype(out_dtype).itemsize < 4:
        mat_dtype = out_dtype
    else:
        mat_dtype = jnp.float32

    # Resampling matrices: out[c] = L @ x[c] @ R
    Ll = jnp.asarray(_adaptive_avg_matrix_np(H, h_l), dtype=mat_dtype)
    Rl = jnp.asarray(_adaptive_avg_matrix_np(W, w_l).T, dtype=mat_dtype)
    Lm = jnp.asarray(_adaptive_avg_matrix_np(H, h_m), dtype=mat_dtype)
    Rm = jnp.asarray(_adaptive_avg_matrix_np(W, w_m).T, dtype=mat_dtype)
    Ln = jnp.asarray(_bilinear_matrix_np(H, h_n), dtype=mat_dtype)
    Rn = jnp.asarray(_bilinear_matrix_np(W, w_n).T, dtype=mat_dtype)

    # Uniform channel split across all four segments (must divide every C_i).
    itemsize = jnp.dtype(out_dtype).itemsize
    per_batch_in = itemsize * (C_l * h_l * w_l + C_m * h_m * w_m
                               + C_s_ * H * W + C_n * h_n * w_n)
    g = math.gcd(math.gcd(C_l, C_m), math.gcd(C_s_, C_n))
    n_chunks = _num_chunks(g, per_batch_in, min_step_bytes, max_step_bytes)

    c_l, c_m, c_s, c_n = (c // n_chunks for c in (C_l, C_m, C_s_, C_n))
    off_l, off_m, off_s, off_n = 0, C_l, C_l + C_m, C_l + C_m + C_s_

    def kernel(xl_ref, xm_ref, xs_ref, xn_ref,
               Ll_ref, Rl_ref, Lm_ref, Rm_ref, Ln_ref, Rn_ref, o_ref):
        j = pl.program_id(1)

        def resample_into(x_ref, L_ref, R_ref, base_off, chunk):
            x = x_ref[...]                                  # (chunk, h_in, w_in), native dtype
            ch, h_in, w_in = x.shape
            h_out = L_ref.shape[0]
            w_out = R_ref.shape[1]
            # W-contraction: one matmul with M = chunk*h_in (free sublane merge).
            t = jnp.dot(x.reshape(ch * h_in, w_in), R_ref[...],
                        preferred_element_type=jnp.float32)
            t = t.reshape(ch, h_in, w_out)
            # H-contraction: channel-batched matmul (stays on the MXU).
            Lb = jnp.broadcast_to(L_ref[...].astype(jnp.float32), (ch, h_out, h_in))
            y = jax.lax.dot_general(
                Lb, t,
                dimension_numbers=(((2,), (1,)), ((0,), (0,))),
                preferred_element_type=jnp.float32)
            start = base_off + j * chunk
            o_ref[pl.ds(start, chunk), :, :] = y.astype(o_ref.dtype)

        resample_into(xl_ref, Ll_ref, Rl_ref, off_l, c_l)   # adaptive avg pool
        resample_into(xm_ref, Lm_ref, Rm_ref, off_m, c_m)   # adaptive avg pool
        # x_s pass-through straight into its channel slab (fused concat).
        o_ref[pl.ds(off_s + j * c_s, c_s), :, :] = xs_ref[...].astype(o_ref.dtype)
        resample_into(xn_ref, Ln_ref, Rn_ref, off_n, c_n)   # bilinear upsample

    return pl.pallas_call(
        kernel,
        out_shape=jax.ShapeDtypeStruct((B, C_total, H, W), out_dtype),
        grid=(B, n_chunks),
        in_specs=[
            pl.BlockSpec((None, c_l, h_l, w_l), lambda b, j: (b, j, 0, 0)),
            pl.BlockSpec((None, c_m, h_m, w_m), lambda b, j: (b, j, 0, 0)),
            pl.BlockSpec((None, c_s, H, W), lambda b, j: (b, j, 0, 0)),
            pl.BlockSpec((None, c_n, h_n, w_n), lambda b, j: (b, j, 0, 0)),
            pl.BlockSpec(Ll.shape, lambda b, j: (0, 0)),
            pl.BlockSpec(Rl.shape, lambda b, j: (0, 0)),
            pl.BlockSpec(Lm.shape, lambda b, j: (0, 0)),
            pl.BlockSpec(Rm.shape, lambda b, j: (0, 0)),
            pl.BlockSpec(Ln.shape, lambda b, j: (0, 0)),
            pl.BlockSpec(Rn.shape, lambda b, j: (0, 0)),
        ],
        # Output block is resident across the chunk axis (each step fills its
        # channel range) and written back once per batch element.
        out_specs=pl.BlockSpec((None, C_total, H, W), lambda b, j: (b, 0, 0, 0)),
        compiler_params=pltpu.CompilerParams(
            dimension_semantics=("parallel", "arbitrary"),
            vmem_limit_bytes=64 * 1024 * 1024),
    )(x_l, x_m, x_s, x_n, Ll, Rl, Lm, Rm, Ln, Rn)


# ---------------------------------------------------------------------------
# Pure numpy reference for sanity checking
# ---------------------------------------------------------------------------
def _ref_adaptive_avg(x, H, W):
    B, C, h, w = x.shape
    out = np.zeros((B, C, H, W), np.float32)
    for oy in range(H):
        ys, ye = (oy * h) // H, -((-(oy + 1) * h) // H)
        for ox in range(W):
            xs_, xe = (ox * w) // W, -((-(ox + 1) * w) // W)
            out[:, :, oy, ox] = x[:, :, ys:ye, xs_:xe].mean(axis=(2, 3))
    return out


def _ref_bilinear(x, H, W):
    B, C, h, w = x.shape
    out = np.zeros((B, C, H, W), np.float32)
    for oy in range(H):
        sy = max((oy + 0.5) * (h / H) - 0.5, 0.0)
        y0 = min(int(np.floor(sy)), h - 1)
        y1 = min(y0 + 1, h - 1)
        fy = sy - y0
        for ox in range(W):
            sx = max((ox + 0.5) * (w / W) - 0.5, 0.0)
            x0 = min(int(np.floor(sx)), w - 1)
            x1 = min(x0 + 1, w - 1)
            fx = sx - x0
            out[:, :, oy, ox] = ((1 - fy) * (1 - fx) * x[:, :, y0, x0]
                                 + (1 - fy) * fx * x[:, :, y0, x1]
                                 + fy * (1 - fx) * x[:, :, y1, x0]
                                 + fy * fx * x[:, :, y1, x1])
    return out


if __name__ == "__main__":
    key = jax.random.PRNGKey(0)
    k1, k2, k3, k4 = jax.random.split(key, 4)

    B, H, W = 2, 16, 16
    x_l = jax.random.normal(k1, (B, 4, 4 * H, 4 * W), jnp.float32)   # largest scale
    x_m = jax.random.normal(k2, (B, 4, 2 * H, 2 * W), jnp.float32)
    x_s = jax.random.normal(k3, (B, 8, H, W), jnp.float32)           # target scale
    x_n = jax.random.normal(k4, (B, 4, H // 2, W // 2), jnp.float32)  # smallest scale

    xl_np, xm_np, xs_np, xn_np = (np.asarray(a) for a in (x_l, x_m, x_s, x_n))
    ref = np.concatenate(
        [_ref_adaptive_avg(xl_np, H, W),
         _ref_adaptive_avg(xm_np, H, W),
         xs_np,
         _ref_bilinear(xn_np, H, W)], axis=1)

    # Default path (inputs are small -> single channel chunk per batch element).
    out = jax.block_until_ready(sim_fusion_4in((x_l, x_m, x_s, x_n)))
    assert out.shape == (B, 4 + 4 + 8 + 4, H, W), out.shape
    np.testing.assert_allclose(np.asarray(out), ref, rtol=1e-5, atol=1e-5)

    # Also exercise the channel-chunked (multi grid-step, pipelined) path.
    out_chunked = jax.block_until_ready(
        sim_fusion_4in((x_l, x_m, x_s, x_n), min_step_bytes=16 * 1024))
    np.testing.assert_allclose(np.asarray(out_chunked), ref, rtol=1e-5, atol=1e-5)

    print("KERNEL_OK")
</pallas_src>

<mosaic_0001>
module attributes {stable_mosaic.version = 11 : i64} {
  func.func @kernel(%arg0: i32, %arg1: i32, %arg2: memref<1x4x64x64xf32, #tpu.memory_space<vmem>>, %arg3: memref<1x4x32x32xf32, #tpu.memory_space<vmem>>, %arg4: memref<1x8x16x16xf32, #tpu.memory_space<vmem>>, %arg5: memref<1x4x8x8xf32, #tpu.memory_space<vmem>>, %arg6: memref<16x64xf32, #tpu.memory_space<vmem>>, %arg7: memref<64x16xf32, #tpu.memory_space<vmem>>, %arg8: memref<16x32xf32, #tpu.memory_space<vmem>>, %arg9: memref<32x16xf32, #tpu.memory_space<vmem>>, %arg10: memref<16x8xf32, #tpu.memory_space<vmem>>, %arg11: memref<8x16xf32, #tpu.memory_space<vmem>>, %arg12: memref<1x20x16x16xf32, #tpu.memory_space<vmem>>) attributes {dimension_semantics = [#tpu.dimension_semantics<parallel>, #tpu.dimension_semantics<arbitrary>], iteration_bounds = array<i64: 2, 1>, scalar_prefetch = 0 : i64, scratch_operands = 0 : i64, tpu.core_type = #tpu.core_type<tc>, window_params = [{transform_indices = @transform_0, window_bounds = array<i64: 1, 4, 64, 64>}, {transform_indices = @transform_1, window_bounds = array<i64: 1, 4, 32, 32>}, {transform_indices = @transform_2, window_bounds = array<i64: 1, 8, 16, 16>}, {transform_indices = @transform_3, window_bounds = array<i64: 1, 4, 8, 8>}, {pipeline_mode = #tpu.pipeline_mode<synchronous>, transform_indices = @transform_4, window_bounds = array<i64: 16, 64>}, {pipeline_mode = #tpu.pipeline_mode<synchronous>, transform_indices = @transform_5, window_bounds = array<i64: 64, 16>}, {pipeline_mode = #tpu.pipeline_mode<synchronous>, transform_indices = @transform_6, window_bounds = array<i64: 16, 32>}, {pipeline_mode = #tpu.pipeline_mode<synchronous>, transform_indices = @transform_7, window_bounds = array<i64: 32, 16>}, {pipeline_mode = #tpu.pipeline_mode<synchronous>, transform_indices = @transform_8, window_bounds = array<i64: 16, 8>}, {pipeline_mode = #tpu.pipeline_mode<synchronous>, transform_indices = @transform_9, window_bounds = array<i64: 8, 16>}, {transform_indices = @transform_10, window_bounds = array<i64: 1, 20, 16, 16>}]} {
    %c0 = arith.constant 0 : index
    %c0_0 = arith.constant 0 : index
    %c0_1 = arith.constant 0 : index
    %c0_2 = arith.constant 0 : index
    %0 = vector.load %arg2[%c0, %c0_0, %c0_1, %c0_2] : memref<1x4x64x64xf32, #tpu.memory_space<vmem>>, vector<1x4x64x64xf32>
    %1 = vector.shape_cast %0 : vector<1x4x64x64xf32> to vector<4x64x64xf32>
    %2 = vector.shape_cast %1 : vector<4x64x64xf32> to vector<256x64xf32>
    %c0_3 = arith.constant 0 : index
    %c0_4 = arith.constant 0 : index
    %3 = vector.load %arg7[%c0_3, %c0_4] : memref<64x16xf32, #tpu.memory_space<vmem>>, vector<64x16xf32>
    %cst = arith.constant dense<0.000000e+00> : vector<256x16xf32>
    %4 = tpu.matmul %2, %3, %cst {dimension_numbers = #tpu.dot_dimension_numbers<[1], [0], [0], [1], [0, 0, 1, 1], [], []>} : vector<256x64xf32>, vector<64x16xf32>, vector<256x16xf32> -> vector<256x16xf32>
    %5 = vector.shape_cast %4 : vector<256x16xf32> to vector<4x64x16xf32>
    %c0_5 = arith.constant 0 : index
    %c0_6 = arith.constant 0 : index
    %6 = vector.load %arg6[%c0_5, %c0_6] : memref<16x64xf32, #tpu.memory_space<vmem>>, vector<16x64xf32>
    %7 = vector.shape_cast %6 : vector<16x64xf32> to vector<1x16x64xf32>
    %8 = vector.broadcast %7 : vector<1x16x64xf32> to vector<4x16x64xf32>
    %cst_7 = arith.constant dense<0.000000e+00> : vector<4x16x16xf32>
    %9 = tpu.matmul %8, %5, %cst_7 {dimension_numbers = #tpu.dot_dimension_numbers<[2], [1], [1], [2], [0, 0, 0, 1, 1, 2], [0], [0]>} : vector<4x16x64xf32>, vector<4x64x16xf32>, vector<4x16x16xf32> -> vector<4x16x16xf32>
    %c4_i32 = arith.constant 4 : i32
    %10 = arith.muli %arg1, %c4_i32 : i32
    %c0_i32 = arith.constant 0 : i32
    %11 = arith.addi %c0_i32, %10 : i32
    %c0_8 = arith.constant 0 : index
    %12 = arith.index_cast %11 : i32 to index
    %c0_9 = arith.constant 0 : index
    %c0_10 = arith.constant 0 : index
    %13 = vector.load %arg12[%c0_8, %12, %c0_9, %c0_10] : memref<1x20x16x16xf32, #tpu.memory_space<vmem>>, vector<1x4x16x16xf32>
    %14 = vector.shape_cast %13 : vector<1x4x16x16xf32> to vector<4x16x16xf32>
    %15 = vector.shape_cast %9 : vector<4x16x16xf32> to vector<1x4x16x16xf32>
    tpu.vector_store %arg12[%c0_8, %12, %c0_9, %c0_10], %15 {strides = array<i32>} : memref<1x20x16x16xf32, #tpu.memory_space<vmem>>, vector<1x4x16x16xf32>,
    %c0_11 = arith.constant 0 : index
    %c0_12 = arith.constant 0 : index
    %c0_13 = arith.constant 0 : index
    %c0_14 = arith.constant 0 : index
    %16 = vector.load %arg3[%c0_11, %c0_12, %c0_13, %c0_14] : memref<1x4x32x32xf32, #tpu.memory_space<vmem>>, vector<1x4x32x32xf32>
    %17 = vector.shape_cast %16 : vector<1x4x32x32xf32> to vector<4x32x32xf32>
    %18 = vector.shape_cast %17 : vector<4x32x32xf32> to vector<128x32xf32>
    %c0_15 = arith.constant 0 : index
    %c0_16 = arith.constant 0 : index
    %19 = vector.load %arg9[%c0_15, %c0_16] : memref<32x16xf32, #tpu.memory_space<vmem>>, vector<32x16xf32>
    %cst_17 = arith.constant dense<0.000000e+00> : vector<128x16xf32>
    %20 = tpu.matmul %18, %19, %cst_17 {dimension_numbers = #tpu.dot_dimension_numbers<[1], [0], [0], [1], [0, 0, 1, 1], [], []>} : vector<128x32xf32>, vector<32x16xf32>, vector<128x16xf32> -> vector<128x16xf32>
    %21 = vector.shape_cast %20 : vector<128x16xf32> to vector<4x32x16xf32>
    %c0_18 = arith.constant 0 : index
    %c0_19 = arith.constant 0 : index
    %22 = vector.load %arg8[%c0_18, %c0_19] : memref<16x32xf32, #tpu.memory_space<vmem>>, vector<16x32xf32>
    %23 = vector.shape_cast %22 : vector<16x32xf32> to vector<1x16x32xf32>
    %24 = vector.broadcast %23 : vector<1x16x32xf32> to vector<4x16x32xf32>
    %cst_20 = arith.constant dense<0.000000e+00> : vector<4x16x16xf32>
    %25 = tpu.matmul %24, %21, %cst_20 {dimension_numbers = #tpu.dot_dimension_numbers<[2], [1], [1], [2], [0, 0, 0, 1, 1, 2], [0], [0]>} : vector<4x16x32xf32>, vector<4x32x16xf32>, vector<4x16x16xf32> -> vector<4x16x16xf32>
    %c4_i32_21 = arith.constant 4 : i32
    %26 = arith.muli %arg1, %c4_i32_21 : i32
    %c4_i32_22 = arith.constant 4 : i32
    %27 = arith.addi %c4_i32_22, %26 : i32
    %c0_23 = arith.constant 0 : index
    %28 = arith.index_cast %27 : i32 to index
    %c0_24 = arith.constant 0 : index
    %c0_25 = arith.constant 0 : index
    %29 = vector.load %arg12[%c0_23, %28, %c0_24, %c0_25] : memref<1x20x16x16xf32, #tpu.memory_space<vmem>>, vector<1x4x16x16xf32>
    %30 = vector.shape_cast %29 : vector<1x4x16x16xf32> to vector<4x16x16xf32>
    %31 = vector.shape_cast %25 : vector<4x16x16xf32> to vector<1x4x16x16xf32>
    tpu.vector_store %arg12[%c0_23, %28, %c0_24, %c0_25], %31 {strides = array<i32>} : memref<1x20x16x16xf32, #tpu.memory_space<vmem>>, vector<1x4x16x16xf32>,
    %c0_26 = arith.constant 0 : index
    %c0_27 = arith.constant 0 : index
    %c0_28 = arith.constant 0 : index
    %c0_29 = arith.constant 0 : index
    %32 = vector.load %arg4[%c0_26, %c0_27, %c0_28, %c0_29] : memref<1x8x16x16xf32, #tpu.memory_space<vmem>>, vector<1x8x16x16xf32>
    %33 = vector.shape_cast %32 : vector<1x8x16x16xf32> to vector<8x16x16xf32>
    %c8_i32 = arith.constant 8 : i32
    %34 = arith.muli %arg1, %c8_i32 : i32
    %c8_i32_30 = arith.constant 8 : i32
    %35 = arith.addi %c8_i32_30, %34 : i32
    %c0_31 = arith.constant 0 : index
    %36 = arith.index_cast %35 : i32 to index
    %c0_32 = arith.constant 0 : index
    %c0_33 = arith.constant 0 : index
    %37 = vector.load %arg12[%c0_31, %36, %c0_32, %c0_33] : memref<1x20x16x16xf32, #tpu.memory_space<vmem>>, vector<1x8x16x16xf32>
    %38 = vector.shape_cast %37 : vector<1x8x16x16xf32> to vector<8x16x16xf32>
    %39 = vector.shape_cast %33 : vector<8x16x16xf32> to vector<1x8x16x16xf32>
    tpu.vector_store %arg12[%c0_31, %36, %c0_32, %c0_33], %39 {strides = array<i32>} : memref<1x20x16x16xf32, #tpu.memory_space<vmem>>, vector<1x8x16x16xf32>,
    %c0_34 = arith.constant 0 : index
    %c0_35 = arith.constant 0 : index
    %c0_36 = arith.constant 0 : index
    %c0_37 = arith.constant 0 : index
    %40 = vector.load %arg5[%c0_34, %c0_35, %c0_36, %c0_37] : memref<1x4x8x8xf32, #tpu.memory_space<vmem>>, vector<1x4x8x8xf32>
    %41 = vector.shape_cast %40 : vector<1x4x8x8xf32> to vector<4x8x8xf32>
    %42 = vector.shape_cast %41 : vector<4x8x8xf32> to vector<32x8xf32>
    %c0_38 = arith.constant 0 : index
    %c0_39 = arith.constant 0 : index
    %43 = vector.load %arg11[%c0_38, %c0_39] : memref<8x16xf32, #tpu.memory_space<vmem>>, vector<8x16xf32>
    %cst_40 = arith.constant dense<0.000000e+00> : vector<32x16xf32>
    %44 = tpu.matmul %42, %43, %cst_40 {dimension_numbers = #tpu.dot_dimension_numbers<[1], [0], [0], [1], [0, 0, 1, 1], [], []>} : vector<32x8xf32>, vector<8x16xf32>, vector<32x16xf32> -> vector<32x16xf32>
    %45 = vector.shape_cast %44 : vector<32x16xf32> to vector<4x8x16xf32>
    %c0_41 = arith.constant 0 : index
    %c0_42 = arith.constant 0 : index
    %46 = vector.load %arg10[%c0_41, %c0_42] : memref<16x8xf32, #tpu.memory_space<vmem>>, vector<16x8xf32>
    %47 = vector.shape_cast %46 : vector<16x8xf32> to vector<1x16x8xf32>
    %48 = vector.broadcast %47 : vector<1x16x8xf32> to vector<4x16x8xf32>
    %cst_43 = arith.constant dense<0.000000e+00> : vector<4x16x16xf32>
    %49 = tpu.matmul %48, %45, %cst_43 {dimension_numbers = #tpu.dot_dimension_numbers<[2], [1], [1], [2], [0, 0, 0, 1, 1, 2], [0], [0]>} : vector<4x16x8xf32>, vector<4x8x16xf32>, vector<4x16x16xf32> -> vector<4x16x16xf32>
    %c4_i32_44 = arith.constant 4 : i32
    %50 = arith.muli %arg1, %c4_i32_44 : i32
    %c16_i32 = arith.constant 16 : i32
    %51 = arith.addi %c16_i32, %50 : i32
    %c0_45 = arith.constant 0 : index
    %52 = arith.index_cast %51 : i32 to index
    %c0_46 = arith.constant 0 : index
    %c0_47 = arith.constant 0 : index
    %53 = vector.load %arg12[%c0_45, %52, %c0_46, %c0_47] : memref<1x20x16x16xf32, #tpu.memory_space<vmem>>, vector<1x4x16x16xf32>
    %54 = vector.shape_cast %53 : vector<1x4x16x16xf32> to vector<4x16x16xf32>
    %55 = vector.shape_cast %49 : vector<4x16x16xf32> to vector<1x4x16x16xf32>
    tpu.vector_store %arg12[%c0_45, %52, %c0_46, %c0_47], %55 {strides = array<i32>} : memref<1x20x16x16xf32, #tpu.memory_space<vmem>>, vector<1x4x16x16xf32>,
    return
  }
  func.func @transform_0(%arg0: i32, %arg1: i32) -> (i32, i32, i32, i32) {
    %c0_i32 = arith.constant 0 : i32
    %c0_i32_0 = arith.constant 0 : i32
    %c0_i32_1 = arith.constant 0 : i32
    return %arg0, %arg1, %c0_i32, %c0_i32_0 : i32, i32, i32, i32
  }
  func.func @transform_1(%arg0: i32, %arg1: i32) -> (i32, i32, i32, i32) {
    %c0_i32 = arith.constant 0 : i32
    %c0_i32_0 = arith.constant 0 : i32
    %c0_i32_1 = arith.constant 0 : i32
    return %arg0, %arg1, %c0_i32, %c0_i32_0 : i32, i32, i32, i32
  }
  func.func @transform_2(%arg0: i32, %arg1: i32) -> (i32, i32, i32, i32) {
    %c0_i32 = arith.constant 0 : i32
    %c0_i32_0 = arith.constant 0 : i32
    %c0_i32_1 = arith.constant 0 : i32
    return %arg0, %arg1, %c0_i32, %c0_i32_0 : i32, i32, i32, i32
  }
  func.func @transform_3(%arg0: i32, %arg1: i32) -> (i32, i32, i32, i32) {
    %c0_i32 = arith.constant 0 : i32
    %c0_i32_0 = arith.constant 0 : i32
    %c0_i32_1 = arith.constant 0 : i32
    return %arg0, %arg1, %c0_i32, %c0_i32_0 : i32, i32, i32, i32
  }
  func.func @transform_4(%arg0: i32, %arg1: i32) -> (i32, i32) {
    %c0_i32 = arith.constant 0 : i32
    %c0_i32_0 = arith.constant 0 : i32
    %c0_i32_1 = arith.constant 0 : i32
    return %c0_i32, %c0_i32_0 : i32, i32
  }
  func.func @transform_5(%arg0: i32, %arg1: i32) -> (i32, i32) {
    %c0_i32 = arith.constant 0 : i32
    %c0_i32_0 = arith.constant 0 : i32
    %c0_i32_1 = arith.constant 0 : i32
    return %c0_i32, %c0_i32_0 : i32, i32
  }
  func.func @transform_6(%arg0: i32, %arg1: i32) -> (i32, i32) {
    %c0_i32 = arith.constant 0 : i32
    %c0_i32_0 = arith.constant 0 : i32
    %c0_i32_1 = arith.constant 0 : i32
    return %c0_i32, %c0_i32_0 : i32, i32
  }
  func.func @transform_7(%arg0: i32, %arg1: i32) -> (i32, i32) {
    %c0_i32 = arith.constant 0 : i32
    %c0_i32_0 = arith.constant 0 : i32
    %c0_i32_1 = arith.constant 0 : i32
    return %c0_i32, %c0_i32_0 : i32, i32
  }
  func.func @transform_8(%arg0: i32, %arg1: i32) -> (i32, i32) {
    %c0_i32 = arith.constant 0 : i32
    %c0_i32_0 = arith.constant 0 : i32
    %c0_i32_1 = arith.constant 0 : i32
    return %c0_i32, %c0_i32_0 : i32, i32
  }
  func.func @transform_9(%arg0: i32, %arg1: i32) -> (i32, i32) {
    %c0_i32 = arith.constant 0 : i32
    %c0_i32_0 = arith.constant 0 : i32
    %c0_i32_1 = arith.constant 0 : i32
    return %c0_i32, %c0_i32_0 : i32, i32
  }
  func.func @transform_10(%arg0: i32, %arg1: i32) -> (i32, i32, i32, i32) {
    %c0_i32 = arith.constant 0 : i32
    %c0_i32_0 = arith.constant 0 : i32
    %c0_i32_1 = arith.constant 0 : i32
    %c0_i32_2 = arith.constant 0 : i32
    return %arg0, %c0_i32, %c0_i32_0, %c0_i32_1 : i32, i32, i32, i32
  }
}

</mosaic_0001>

<llo_original>
// kernel: tpu_custom_call.1
$region0: #{tpu_custom_call.1}
  #allocation0 [shape = 'u32[]', space=smem, size = 0x4, offset = 0x4, fixed_abs, tag = 'smem constant byte address 0x4 - core index']
  #allocation1 [shape = 'u32[144,128]{1,0:T(1,128)}', space=vmem, size = 0x12000, scoped, tag = 'internal scratch']
  %s0 = inlined_call_operand.hbm [shape: f32[2,4,64,64], index: 0, kind: input, shape index: {}]
  %s1 = inlined_call_operand.hbm [shape: f32[2,4,32,32], index: 1, kind: input, shape index: {}]
  %s2 = inlined_call_operand.hbm [shape: f32[2,8,16,16], index: 2, kind: input, shape index: {}]
  %s3 = inlined_call_operand.vmem [shape: f32[2,4,8,8], index: 3, kind: input, shape index: {}]
  %s4 = inlined_call_operand.vmem [shape: f32[16,64], index: 4, kind: input, shape index: {}]
  %s5 = inlined_call_operand.vmem [shape: f32[64,16], index: 5, kind: input, shape index: {}]
  %s6 = inlined_call_operand.vmem [shape: f32[16,32], index: 6, kind: input, shape index: {}]
  %s7 = inlined_call_operand.vmem [shape: f32[32,16], index: 7, kind: input, shape index: {}]
  %s8 = inlined_call_operand.vmem [shape: f32[16,8], index: 8, kind: input, shape index: {}]
  %s9 = inlined_call_operand.vmem [shape: f32[8,16], index: 9, kind: input, shape index: {}]
  %s10 = inlined_call_operand.vmem [shape: f32[2,20,16,16], index: 10, kind: output, shape index: {}]
  %s11 = sld [smem:[#allocation0]]
  $region85: #{tpu_custom_call.1} parent=0
    _
  %s13 = ssub.s32 1, %s11
  %s14 = scalar_select 0, %s13, %s11
  $region1: #{tpu_custom_call.1} parent=0
    #allocation2 [shape = 'u8[262144]{0}', space=vmem, size = 0x40000, scoped, tag = 'input window, operand 0']
    #allocation3 [shape = 's32[2]{0}', space=sflag, size = 0x8, scoped, tag = 'scoped memory for tpu_custom_call.1']
    #allocation4 [shape = 'u8[131072]{0}', space=vmem, size = 0x20000, scoped, tag = 'input window, operand 1']
    #allocation5 [shape = 's32[2]{0}', space=sflag, size = 0x8, scoped, tag = 'scoped memory for tpu_custom_call.1']
    #allocation6 [shape = 'u8[131072]{0}', space=vmem, size = 0x20000, scoped, tag = 'input window, operand 2']
    %15 = vsyncpa [#allocation3], 0
    %s16 = scalar_lea.sflag [#allocation3], 1
    %17 = vsyncpa %s16, 0
    %18 = vsyncpa [#allocation5], 0
    %s19 = scalar_lea.sflag [#allocation5], 1
    %20 = vsyncpa %s19, 0
    loop: start=0, step=1, limit=4
    $region2: #{tpu_custom_call.1} parent=1 // loop_pre_header
      _
    $region3: #{tpu_custom_call.1} parent=1 // loop_header
      %s22 = sphi 0, %s26
      %p23 = scmp.ge.s32.totalorder %s22, 4
      %s29 = sphi 0, %s41
      %s30 = sphi 0, %s37
      %s31 = sphi 0, %s29
      %s32 = sphi 0, %s30
      %s33 = sphi 0, %s31
      %s34 = sphi 0, %s32
      %s46 = sphi 0, %s48
      %s49 = sphi 0, %s46
      %s50 = sphi 0, %s49
      %s66 = sphi 0, %s50
      %s74 = sphi 0, %s76
      %s77 = sphi 0, %s74
      %s78 = sphi 0, %s77
      %s94 = sphi 0, %s78
      %s102 = sphi 0, %s104
      %s105 = sphi 0, %s102
      %s106 = sphi 0, %s105
      %s122 = sphi 0, %s106
      %s130 = sphi 0, %s132
      %s133 = sphi 0, %s130
      %s134 = sphi 0, %s133
      %s150 = sphi 0, %s134
      %s154 = sphi 0, %s154
      %s156 = sphi 0, %s154
      %s157 = sphi 0, %s156
      %s171 = sphi 0, %s157
      %s175 = sphi 0, %s175
      %s177 = sphi 0, %s175
      %s178 = sphi 0, %s177
      %s192 = sphi 0, %s178
      %s196 = sphi 0, %s196
      %s198 = sphi 0, %s196
      %s199 = sphi 0, %s198
      %s213 = sphi 0, %s199
      %s217 = sphi 0, %s217
      %s219 = sphi 0, %s217
      %s220 = sphi 0, %s219
      %s234 = sphi 0, %s220
      %s238 = sphi 0, %s238
      %s240 = sphi 0, %s238
      %s241 = sphi 0, %s240
      %s255 = sphi 0, %s241
      %s259 = sphi 0, %s259
      %s261 = sphi 0, %s259
      %s262 = sphi 0, %s261
      %s276 = sphi 0, %s262
      %s282 = sphi 0, %s284
      %s285 = sphi 0, %s282
      %s286 = sphi 0, %s285
      %s302 = sphi 0, %s286
    $region4: #{tpu_custom_call.1} parent=1 // loop_header_branch
      %25 = sbr.rel (%p23) target = $region8
    $region5: #{tpu_custom_call.1} parent=1 // loop_body
      %s27 = ssub.s32 %s22, 1
      %s28 = ssub.s32 %s22, 2
      %s35 = sadd.s32 1, %s30
      %p36 = scmp.ge.s32.totalorder %s35, 1
      %s37 = scalar_select %p36, 0, %s35
      %s38 = sadd.s32 1, %s29
      %s39 = scalar_select %p36, %s38, %s29
      %p40 = scmp.ge.s32.totalorder %s39, 2
      %s41 = scalar_select %p40, 0, %s39
      %s42 = ssub.s32 %s29, %s41
      %s43 = ssub.s32 %s30, %s37
      %s44 = sor.u32 %s42, %s43
      %p45 = scmp.eq.s32.totalorder %s44, 0
      %s47 = sadd.s32 %s46, 1
      %s48 = scalar_select %p45, %s46, %s47
      %p51 = pneg %p45
      %p52 = scmp.eq.s32.totalorder %s22, 1
      %p53 = por %p51, %p52
      %p54 = scmp.ne.s32.totalorder %s46, %s49
      %p55 = scmp.eq.s32.totalorder %s22, 0
      %p56 = por %p54, %p55
      %p57 = scmp.ne.s32.totalorder %s46, %s49
      %p58 = scmp.eq.s32.totalorder %s27, 1
      %p59 = por %p57, %p58
      %p60 = scmp.ne.s32.totalorder %s49, %s50
      %p61 = scmp.eq.s32.totalorder %s27, 0
      %p62 = por %p60, %p61
      %p63 = scmp.ne.s32.totalorder %s49, %s50
      %p64 = scmp.eq.s32.totalorder %s28, 1
      %p65 = por %p63, %p64
      %p67 = scmp.ne.s32.totalorder %s50, %s66
      %p68 = scmp.eq.s32.totalorder %s28, 0
      %p69 = por %p67, %p68
      %s70 = ssub.s32 %s29, %s41
      %s71 = ssub.s32 %s30, %s37
      %s72 = sor.u32 %s70, %s71
      %p73 = scmp.eq.s32.totalorder %s72, 0
      %s75 = sadd.s32 %s74, 1
      %s76 = scalar_select %p73, %s74, %s75
      %p79 = pneg %p73
      %p80 = scmp.eq.s32.totalorder %s22, 1
      %p81 = por %p79, %p80
      %p82 = scmp.ne.s32.totalorder %s74, %s77
      %p83 = scmp.eq.s32.totalorder %s22, 0
      %p84 = por %p82, %p83
      %p85 = scmp.ne.s32.totalorder %s74, %s77
      %p86 = scmp.eq.s32.totalorder %s27, 1
      %p87 = por %p85, %p86
      %p88 = scmp.ne.s32.totalorder %s77, %s78
      %p89 = scmp.eq.s32.totalorder %s27, 0
      %p90 = por %p88, %p89
      %p91 = scmp.ne.s32.totalorder %s77, %s78
      %p92 = scmp.eq.s32.totalorder %s28, 1
      %p93 = por %p91, %p92
      %p95 = scmp.ne.s32.totalorder %s78, %s94
      %p96 = scmp.eq.s32.totalorder %s28, 0
      %p97 = por %p95, %p96
      %s98 = ssub.s32 %s29, %s41
      %s99 = ssub.s32 %s30, %s37
      %s100 = sor.u32 %s98, %s99
      %p101 = scmp.eq.s32.totalorder %s100, 0
      %s103 = sadd.s32 %s102, 1
      %s104 = scalar_select %p101, %s102, %s103
      %p107 = pneg %p101
      %p108 = scmp.eq.s32.totalorder %s22, 1
      %p109 = por %p107, %p108
      %p110 = scmp.ne.s32.totalorder %s102, %s105
      %p111 = scmp.eq.s32.totalorder %s22, 0
      %p112 = por %p110, %p111
      %p113 = scmp.ne.s32.totalorder %s102, %s105
      %p114 = scmp.eq.s32.totalorder %s27, 1
      %p115 = por %p113, %p114
      %p116 = scmp.ne.s32.totalorder %s105, %s106
      %p117 = scmp.eq.s32.totalorder %s27, 0
      %p118 = por %p116, %p117
      %p119 = scmp.ne.s32.totalorder %s105, %s106
      %p120 = scmp.eq.s32.totalorder %s28, 1
      %p121 = por %p119, %p120
      %p123 = scmp.ne.s32.totalorder %s106, %s122
      %p124 = scmp.eq.s32.totalorder %s28, 0
      %p125 = por %p123, %p124
      %s126 = ssub.s32 %s29, %s41
      %s127 = ssub.s32 %s30, %s37
      %s128 = sor.u32 %s126, %s127
      %p129 = scmp.eq.s32.totalorder %s128, 0
      %s131 = sadd.s32 %s130, 1
      %s132 = scalar_select %p129, %s130, %s131
      %p135 = pneg %p129
      %p136 = scmp.eq.s32.totalorder %s22, 1
      %p137 = por %p135, %p136
      %p138 = scmp.ne.s32.totalorder %s130, %s133
      %p139 = scmp.eq.s32.totalorder %s22, 0
      %p140 = por %p138, %p139
      %p141 = scmp.ne.s32.totalorder %s130, %s133
      %p142 = scmp.eq.s32.totalorder %s27, 1
      %p143 = por %p141, %p142
      %p144 = scmp.ne.s32.totalorder %s133, %s134
      %p145 = scmp.eq.s32.totalorder %s27, 0
      %p146 = por %p144, %p145
      %p147 = scmp.ne.s32.totalorder %s133, %s134
      %p148 = scmp.eq.s32.totalorder %s28, 1
      %p149 = por %p147, %p148
      %p151 = scmp.ne.s32.totalorder %s134, %s150
      %p152 = scmp.eq.s32.totalorder %s28, 0
      %p153 = por %p151, %p152
      %s155 = sadd.s32 %s154, 1
      %p158 = scmp.eq.s32.totalorder %s22, 1
      %p159 = scmp.ne.s32.totalorder %s154, %s156
      %p160 = scmp.eq.s32.totalorder %s22, 0
      %p161 = por %p159, %p160
      %p162 = scmp.ne.s32.totalorder %s154, %s156
      %p163 = scmp.eq.s32.totalorder %s27, 1
      %p164 = por %p162, %p163
      %p165 = scmp.ne.s32.totalorder %s156, %s157
      %p166 = scmp.eq.s32.totalorder %s27, 0
      %p167 = por %p165, %p166
      %p168 = scmp.ne.s32.totalorder %s156, %s157
      %p169 = scmp.eq.s32.totalorder %s28, 1
      %p170 = por %p168, %p169
      %p172 = scmp.ne.s32.totalorder %s157, %s171
      %p173 = scmp.eq.s32.totalorder %s28, 0
      %p174 = por %p172, %p173
      %s176 = sadd.s32 %s175, 1
      %p179 = scmp.eq.s32.totalorder %s22, 1
      %p180 = scmp.ne.s32.totalorder %s175, %s177
      %p181 = scmp.eq.s32.totalorder %s22, 0
      %p182 = por %p180, %p181
      %p183 = scmp.ne.s32.totalorder %s175, %s177
      %p184 = scmp.eq.s32.totalorder %s27, 1
      %p185 = por %p183, %p184
      %p186 = scmp.ne.s32.totalorder %s177, %s178
      %p187 = scmp.eq.s32.totalorder %s27, 0
      %p188 = por %p186, %p187
      %p189 = scmp.ne.s32.totalorder %s177, %s178
      %p190 = scmp.eq.s32.totalorder %s28, 1
      %p191 = por %p189, %p190
      %p193 = scmp.ne.s32.totalorder %s178, %s192
      %p194 = scmp.eq.s32.totalorder %s28, 0
      %p195 = por %p193, %p194
      %s197 = sadd.s32 %s196, 1
      %p200 = scmp.eq.s32.totalorder %s22, 1
      %p201 = scmp.ne.s32.totalorder %s196, %s198
      %p202 = scmp.eq.s32.totalorder %s22, 0
      %p203 = por %p201, %p202
      %p204 = scmp.ne.s32.totalorder %s196, %s198
      %p205 = scmp.eq.s32.totalorder %s27, 1
      %p206 = por %p204, %p205
      %p207 = scmp.ne.s32.totalorder %s198, %s199
      %p208 = scmp.eq.s32.totalorder %s27, 0
      %p209 = por %p207, %p208
      %p210 = scmp.ne.s32.totalorder %s198, %s199
      %p211 = scmp.eq.s32.totalorder %s28, 1
      %p212 = por %p210, %p211
      %p214 = scmp.ne.s32.totalorder %s199, %s213
      %p215 = scmp.eq.s32.totalorder %s28, 0
      %p216 = por %p214, %p215
      %s218 = sadd.s32 %s217, 1
      %p221 = scmp.eq.s32.totalorder %s22, 1
      %p222 = scmp.ne.s32.totalorder %s217, %s219
      %p223 = scmp.eq.s32.totalorder %s22, 0
      %p224 = por %p222, %p223
      %p225 = scmp.ne.s32.totalorder %s217, %s219
      %p226 = scmp.eq.s32.totalorder %s27, 1
      %p227 = por %p225, %p226
      %p228 = scmp.ne.s32.totalorder %s219, %s220
      %p229 = scmp.eq.s32.totalorder %s27, 0
      %p230 = por %p228, %p229
      %p231 = scmp.ne.s32.totalorder %s219, %s220
      %p232 = scmp.eq.s32.totalorder %s28, 1
      %p233 = por %p231, %p232
      %p235 = scmp.ne.s32.totalorder %s220, %s234
      %p236 = scmp.eq.s32.totalorder %s28, 0
      %p237 = por %p235, %p236
      %s239 = sadd.s32 %s238, 1
      %p242 = scmp.eq.s32.totalorder %s22, 1
      %p243 = scmp.ne.s32.totalorder %s238, %s240
      %p244 = scmp.eq.s32.totalorder %s22, 0
      %p245 = por %p243, %p244
      %p246 = scmp.ne.s32.totalorder %s238, %s240
      %p247 = scmp.eq.s32.totalorder %s27, 1
      %p248 = por %p246, %p247
      %p249 = scmp.ne.s32.totalorder %s240, %s241
      %p250 = scmp.eq.s32.totalorder %s27, 0
      %p251 = por %p249, %p250
      %p252 = scmp.ne.s32.totalorder %s240, %s241
      %p253 = scmp.eq.s32.totalorder %s28, 1
      %p254 = por %p252, %p253
      %p256 = scmp.ne.s32.totalorder %s241, %s255
      %p257 = scmp.eq.s32.totalorder %s28, 0
      %p258 = por %p256, %p257
      %s260 = sadd.s32 %s259, 1
      %p263 = scmp.eq.s32.totalorder %s22, 1
      %p264 = scmp.ne.s32.totalorder %s259, %s261
      %p265 = scmp.eq.s32.totalorder %s22, 0
      %p266 = por %p264, %p265
      %p267 = scmp.ne.s32.totalorder %s259, %s261
      %p268 = scmp.eq.s32.totalorder %s27, 1
      %p269 = por %p267, %p268
      %p270 = scmp.ne.s32.totalorder %s261, %s262
      %p271 = scmp.eq.s32.totalorder %s27, 0
      %p272 = por %p270, %p271
      %p273 = scmp.ne.s32.totalorder %s261, %s262
      %p274 = scmp.eq.s32.totalorder %s28, 1
      %p275 = por %p273, %p274
      %p277 = scmp.ne.s32.totalorder %s262, %s276
      %p278 = scmp.eq.s32.totalorder %s28, 0
      %p279 = por %p277, %p278
      %s280 = ssub.s32 %s29, %s41
      %p281 = scmp.eq.s32.totalorder %s280, 0
      %s283 = sadd.s32 %s282, 1
      %s284 = scalar_select %p281, %s282, %s283
      %p287 = pneg %p281
      %p288 = scmp.eq.s32.totalorder %s22, 1
      %p289 = por %p287, %p288
      %p290 = scmp.ne.s32.totalorder %s282, %s285
      %p291 = scmp.eq.s32.totalorder %s22, 0
      %p292 = por %p290, %p291
      %p293 = scmp.ne.s32.totalorder %s282, %s285
      %p294 = scmp.eq.s32.totalorder %s27, 1
      %p295 = por %p293, %p294
      %p296 = scmp.ne.s32.totalorder %s285, %s286
      %p297 = scmp.eq.s32.totalorder %s27, 0
      %p298 = por %p296, %p297
      %p299 = scmp.ne.s32.totalorder %s285, %s286
      %p300 = scmp.eq.s32.totalorder %s28, 1
      %p301 = por %p299, %p300
      %p303 = scmp.ne.s32.totalorder %s286, %s302
      %p304 = scmp.eq.s32.totalorder %s28, 0
      %p305 = por %p303, %p304
      %p306 = scmp.le.s32.totalorder 1, %s22
      %p307 = scmp.lt.s32.totalorder %s22, 3
      %p308 = pnand %p306, %p307
      %p309 = pneg %p308
      // Predicated region
      $region9: #{tpu_custom_call.1} parent=5 // pred_check
        _
      $region10: #{tpu_custom_call.1} parent=5 // pred_check_branch
        %311 = sbr.rel (%p308) target = $region12
      $region11: #{tpu_custom_call.1} parent=5 // pred_region
        %s312 = ssub.s32 %s22, 1
        // Predicated region
        $region13: #{tpu_custom_call.1} parent=11 // pred_check
          %p313 = pneg %p167
        $region14: #{tpu_custom_call.1} parent=11 // pred_check_branch
          %315 = sbr.rel (%p313) target = $region16
        $region15: #{tpu_custom_call.1} parent=11 // pred_region
          _
        $region16: #{tpu_custom_call.1} parent=11 // pred_fallthru
          _
        // Predicated region
        $region17: #{tpu_custom_call.1} parent=11 // pred_check
          %p316 = pneg %p188
        $region18: #{tpu_custom_call.1} parent=11 // pred_check_branch
          %318 = sbr.rel (%p316) target = $region20
        $region19: #{tpu_custom_call.1} parent=11 // pred_region
          _
        $region20: #{tpu_custom_call.1} parent=11 // pred_fallthru
          _
        // Predicated region
        $region21: #{tpu_custom_call.1} parent=11 // pred_check
          %p319 = pneg %p209
        $region22: #{tpu_custom_call.1} parent=11 // pred_check_branch
          %321 = sbr.rel (%p319) target = $region24
        $region23: #{tpu_custom_call.1} parent=11 // pred_region
          _
        $region24: #{tpu_custom_call.1} parent=11 // pred_fallthru
          _
        // Predicated region
        $region25: #{tpu_custom_call.1} parent=11 // pred_check
          %p322 = pneg %p230
        $region26: #{tpu_custom_call.1} parent=11 // pred_check_branch
          %324 = sbr.rel (%p322) target = $region28
        $region27: #{tpu_custom_call.1} parent=11 // pred_region
          _
        $region28: #{tpu_custom_call.1} parent=11 // pred_fallthru
          _
        // Predicated region
        $region29: #{tpu_custom_call.1} parent=11 // pred_check
          %p325 = pneg %p251
        $region30: #{tpu_custom_call.1} parent=11 // pred_check_branch
          %327 = sbr.rel (%p325) target = $region32
        $region31: #{tpu_custom_call.1} parent=11 // pred_region
          _
        $region32: #{tpu_custom_call.1} parent=11 // pred_fallthru
          _
        // Predicated region
        $region33: #{tpu_custom_call.1} parent=11 // pred_check
          %p328 = pneg %p272
        $region34: #{tpu_custom_call.1} parent=11 // pred_check_branch
          %330 = sbr.rel (%p328) target = $region36
        $region35: #{tpu_custom_call.1} parent=11 // pred_region
          _
        $region36: #{tpu_custom_call.1} parent=11 // pred_fallthru
          _
      $region12: #{tpu_custom_call.1} parent=5 // pred_fallthru
        _
      %p331 = scmp.lt.s32.totalorder %s22, 2
      // Predicated region
      $region37: #{tpu_custom_call.1} parent=5 // pred_check
        %p332 = pneg %p331
      $region38: #{tpu_custom_call.1} parent=5 // pred_check_branch
        %334 = sbr.rel (%p332) target = $region40
      $region39: #{tpu_custom_call.1} parent=5 // pred_region
        // Predicated region
        $region41: #{tpu_custom_call.1} parent=39 // pred_check
          %p335 = pneg %p56
        $region42: #{tpu_custom_call.1} parent=39 // pred_check_branch
          %337 = sbr.rel (%p335) target = $region44
        $region43: #{tpu_custom_call.1} parent=39 // pred_region
          %s338 = sand.u32 %s46, 1
          %s339 = scalar_lea.sflag [#allocation3], %s338
          %s340 = sand.u32 %s46, 1
          %s341 = smul.addr %s340, 256
          %s342 = scalar_lea.vmem [#allocation2], %s341
          %s343 = smul.u32 4, %s30
          %s345 = ssub.s32 4096, 4096
          %346 = vsyncadd %s339, %s345
          %s347 = smul.addr %s343, 8
          %s348 = smul.addr %s29, 32
          %s349 = sadd.s32 %s347, %s348
          %s350 = smul.addr %s349, 128
          %s351 = scalar_lea.hbm %s0, %s350
          %s352 = sshll.u32 %s342, 4
          %s353 = int_to_ptr.vmem [resolvable:$true] %s352
          %358 = dma.hbm_to_vmem [thread:$0]  %s351, 4096, %s353, %s339, 128, 128, 8
        $region44: #{tpu_custom_call.1} parent=39 // pred_fallthru
          _
        // Predicated region
        $region45: #{tpu_custom_call.1} parent=39 // pred_check
          %p359 = pneg %p84
        $region46: #{tpu_custom_call.1} parent=39 // pred_check_branch
          %361 = sbr.rel (%p359) target = $region48
        $region47: #{tpu_custom_call.1} parent=39 // pred_region
          %s362 = sand.u32 %s22, 1
          %s363 = scalar_lea.sflag [#allocation5], %s362
          %s364 = sand.u32 %s74, 1
          %s365 = smul.addr %s364, 128
          %s366 = scalar_lea.vmem [#allocation4], %s365
          %s367 = smul.u32 4, %s30
          %s369 = ssub.s32 2048, 2048
          %370 = vsyncadd %s363, %s369
          %s371 = smul.addr %s367, 4
          %s372 = smul.addr %s29, 16
          %s373 = sadd.s32 %s371, %s372
          %s374 = smul.addr %s373, 128
          %s375 = scalar_lea.hbm %s1, %s374
          %s376 = sshll.u32 %s366, 4
          %s377 = int_to_ptr.vmem [resolvable:$true] %s376
          %382 = dma.hbm_to_vmem [thread:$0]  %s375, 2048, %s377, %s363, 128, 128, 8
        $region48: #{tpu_custom_call.1} parent=39 // pred_fallthru
          _
        // Predicated region
        $region49: #{tpu_custom_call.1} parent=39 // pred_check
          %p383 = pneg %p112
        $region50: #{tpu_custom_call.1} parent=39 // pred_check_branch
          %385 = sbr.rel (%p383) target = $region52
        $region51: #{tpu_custom_call.1} parent=39 // pred_region
          %s386 = sand.u32 %s22, 1
          %s387 = scalar_lea.sflag [#allocation5], %s386
          %s388 = sand.u32 %s102, 1
          %s389 = smul.addr %s388, 128
          %s390 = scalar_lea.vmem [#allocation6], %s389
          %s391 = smul.u32 8, %s30
          %s393 = ssub.s32 2048, 2048
          %394 = vsyncadd %s387, %s393
          %s395 = smul.addr %s391, 2
          %s396 = smul.addr %s29, 16
          %s397 = sadd.s32 %s395, %s396
          %s398 = smul.addr %s397, 128
          %s399 = scalar_lea.hbm %s2, %s398
          %s400 = sshll.u32 %s390, 4
          %s401 = int_to_ptr.vmem [resolvable:$true] %s400
          %406 = dma.hbm_to_vmem [thread:$0]  %s399, 2048, %s401, %s387, 128, 128, 8
        $region52: #{tpu_custom_call.1} parent=39 // pred_fallthru
          _
        // Predicated region
        $region53: #{tpu_custom_call.1} parent=39 // pred_check
          %p407 = pneg %p140
        $region54: #{tpu_custom_call.1} parent=39 // pred_check_branch
          %409 = sbr.rel (%p407) target = $region56
        $region55: #{tpu_custom_call.1} parent=39 // pred_region
          %s410 = smul.u32 4, %s30
          %p411 = scmp.lt.s32.totalorder %s29, 1
          %s412 = scalar_select %p411, %s29, 1
          %p413 = scmp.lt.s32.totalorder %s410, 3
          %s414 = scalar_select %p413, %s410, 3
          %s415 = smul.addr %s412, 4
          %s416 = sadd.s32 %s414, %s415
          %s417 = smul.addr %s416, 8
          %s418 = scalar_lea.vmem %s3, %s417
          %s419 = smul.u32 4, %s30
        $region56: #{tpu_custom_call.1} parent=39 // pred_fallthru
          _
      $region40: #{tpu_custom_call.1} parent=5 // pred_fallthru
        _
      %p420 = scmp.le.s32.totalorder 1, %s22
      %p421 = scmp.lt.s32.totalorder %s22, 3
      %p422 = pnand %p420, %p421
      %p423 = pneg %p422
      // Predicated region
      $region57: #{tpu_custom_call.1} parent=5 // pred_check
        _
      $region58: #{tpu_custom_call.1} parent=5 // pred_check_branch
        %425 = sbr.rel (%p422) target = $region60
      $region59: #{tpu_custom_call.1} parent=5 // pred_region
        %s426 = ssub.s32 %s22, 1
        %s427 = sand.u32 %s49, 1
        %s428 = scalar_lea.sflag [#allocation3], %s427
        %s429 = sand.u32 %s49, 1
        %s430 = smul.addr %s429, 256
        %s431 = scalar_lea.vmem [#allocation2], %s430
        // Predicated region
        $region61: #{tpu_custom_call.1} parent=59 // pred_check
          %p432 = pneg %p62
        $region62: #{tpu_custom_call.1} parent=59 // pred_check_branch
          %434 = sbr.rel (%p432) target = $region64
        $region63: #{tpu_custom_call.1} parent=59 // pred_region
          %435 = dma.done %s428, 4096
        $region64: #{tpu_custom_call.1} parent=59 // pred_fallthru
          _
        %s436 = sand.u32 %s27, 1
        %s437 = scalar_lea.sflag [#allocation5], %s436
        %s438 = sand.u32 %s77, 1
        %s439 = smul.addr %s438, 128
        %s440 = scalar_lea.vmem [#allocation4], %s439
        // Predicated region
        $region65: #{tpu_custom_call.1} parent=59 // pred_check
          %p441 = pneg %p90
        $region66: #{tpu_custom_call.1} parent=59 // pred_check_branch
          %443 = sbr.rel (%p441) target = $region68
        $region67: #{tpu_custom_call.1} parent=59 // pred_region
          %444 = dma.done %s437, 2048
        $region68: #{tpu_custom_call.1} parent=59 // pred_fallthru
          _
        %s445 = sand.u32 %s27, 1
        %s446 = scalar_lea.sflag [#allocation5], %s445
        %s447 = sand.u32 %s105, 1
        %s448 = smul.addr %s447, 128
        %s449 = scalar_lea.vmem [#allocation6], %s448
        // Predicated region
        $region69: #{tpu_custom_call.1} parent=59 // pred_check
          %p450 = pneg %p118
        $region70: #{tpu_custom_call.1} parent=59 // pred_check_branch
          %452 = sbr.rel (%p450) target = $region72
        $region71: #{tpu_custom_call.1} parent=59 // pred_region
          %453 = dma.done %s446, 2048
        $region72: #{tpu_custom_call.1} parent=59 // pred_fallthru
          _
        %s454 = sand.u32 %s49, 1
        %s455 = scalar_lea.sflag [#allocation3], %s454
        %s456 = sand.u32 %s49, 1
        %s457 = smul.addr %s456, 256
        %s458 = scalar_lea.vmem [#allocation2], %s457
        %p459 = pneg %p62
        %p460 = pneg %p59
        %s461 = sand.u32 %s27, 1
        %s462 = scalar_lea.sflag [#allocation5], %s461
        %s463 = sand.u32 %s77, 1
        %s464 = smul.addr %s463, 128
        %s465 = scalar_lea.vmem [#allocation4], %s464
        %p466 = pneg %p90
        %p467 = pneg %p87
        %s468 = sand.u32 %s27, 1
        %s469 = scalar_lea.sflag [#allocation5], %s468
        %s470 = sand.u32 %s105, 1
        %s471 = smul.addr %s470, 128
        %s472 = scalar_lea.vmem [#allocation6], %s471
        %p473 = pneg %p118
        %p474 = pneg %p115
        %s475 = smul.u32 4, %s32
        %p476 = scmp.lt.s32.totalorder %s31, 1
        %s477 = scalar_select %p476, %s31, 1
        %p478 = scmp.lt.s32.totalorder %s475, 3
        %s479 = scalar_select %p478, %s475, 3
        %s480 = smul.addr %s477, 4
        %s481 = sadd.s32 %s479, %s480
        %s482 = smul.addr %s481, 8
        %s483 = scalar_lea.vmem %s3, %s482
        %p484 = pneg %p146
        %p485 = pneg %p143
        %p486 = pneg %p167
        %p487 = pneg %p164
        %p488 = pneg %p188
        %p489 = pneg %p185
        %p490 = pneg %p209
        %p491 = pneg %p206
        %p492 = pneg %p230
        %p493 = pneg %p227
        %p494 = pneg %p251
        %p495 = pneg %p248
        %p496 = pneg %p272
        %p497 = pneg %p269
        %p498 = pneg %p298
        %p499 = pneg %p295
        %p500 = scmp.lt.s32.totalorder %s31, 1
        %s501 = scalar_select %p500, %s31, 1
        %s502 = smul.addr %s501, 40
        %s503 = smul.addr %s502, 8
        %s504 = scalar_lea.vmem %s10, %s503
        %s505 = smul.u32 4, %s32
        %s506 = smul.u32 4, %s32
        %s507 = smul.u32 8, %s32
        %s508 = smul.u32 4, %s32
        %p509 = scmp.lt.s32.totalorder %s31, 1
        %s510 = scalar_select %p509, %s31, 1
        %p511 = scmp.lt.s32.totalorder %s508, 3
        %s512 = scalar_select %p511, %s508, 3
        %s513 = smul.addr %s510, 4
        %s514 = sadd.s32 %s512, %s513
        %s515 = smul.addr %s514, 8
        %s516 = scalar_lea.vmem %s3, %s515
        %s517 = smul.u32 4, %s32
        %p518 = scmp.lt.s32.totalorder %s31, 1
        %s519 = scalar_select %p518, %s31, 1
        %s520 = smul.addr %s519, 40
        %s521 = smul.addr %s520, 8
        %s522 = scalar_lea.vmem %s10, %s521
        %v523 = vld [vmem:[%s431] sm:$0xff]
        %v524 = vld [vmem:[%s431 + $0x8] sm:$0xff]
        %v525 = vld [vmem:[%s431 + $0x10] sm:$0xff]
        %v526 = vld [vmem:[%s431 + $0x18] sm:$0xff]
        %v527 = vld [vmem:[%s431 + $0x20] sm:$0xff]
        %v528 = vld [vmem:[%s431 + $0x28] sm:$0xff]
        %v529 = vld [vmem:[%s431 + $0x30] sm:$0xff]
        %v530 = vld [vmem:[%s431 + $0x38] sm:$0xff]
        %v531 = vld [vmem:[%s431 + $0x40] sm:$0xff]
        %v532 = vld [vmem:[%s431 + $0x48] sm:$0xff]
        %v533 = vld [vmem:[%s431 + $0x50] sm:$0xff]
        %v534 = vld [vmem:[%s431 + $0x58] sm:$0xff]
        %v535 = vld [vmem:[%s431 + $0x60] sm:$0xff]
        %v536 = vld [vmem:[%s431 + $0x68] sm:$0xff]
        %v537 = vld [vmem:[%s431 + $0x70] sm:$0xff]
        %v538 = vld [vmem:[%s431 + $0x78] sm:$0xff]
        %v539 = vld [vmem:[%s431 + $0x80] sm:$0xff]
        %v540 = vld [vmem:[%s431 + $0x88] sm:$0xff]
        %v541 = vld [vmem:[%s431 + $0x90] sm:$0xff]
        %v542 = vld [vmem:[%s431 + $0x98] sm:$0xff]
        %v543 = vld [vmem:[%s431 + $0xa0] sm:$0xff]
        %v544 = vld [vmem:[%s431 + $0xa8] sm:$0xff]
        %v545 = vld [vmem:[%s431 + $0xb0] sm:$0xff]
        %v546 = vld [vmem:[%s431 + $0xb8] sm:$0xff]
        %v547 = vld [vmem:[%s431 + $0xc0] sm:$0xff]
        %v548 = vld [vmem:[%s431 + $0xc8] sm:$0xff]
        %v549 = vld [vmem:[%s431 + $0xd0] sm:$0xff]
        %v550 = vld [vmem:[%s431 + $0xd8] sm:$0xff]
        %v551 = vld [vmem:[%s431 + $0xe0] sm:$0xff]
        %v552 = vld [vmem:[%s431 + $0xe8] sm:$0xff]
        %v553 = vld [vmem:[%s431 + $0xf0] sm:$0xff]
        %v554 = vld [vmem:[%s431 + $0xf8] sm:$0xff]
        %v555 = vld [vmem:[%s5] sm:$0xff]
        %v556 = vld [vmem:[%s5 + $0x8] sm:$0xff]
        %v557 = vld [vmem:[%s5 + $0x10] sm:$0xff]
        %v558 = vld [vmem:[%s5 + $0x18] sm:$0xff]
        %v559 = vld [vmem:[%s5 + $0x20] sm:$0xff]
        %v560 = vld [vmem:[%s5 + $0x28] sm:$0xff]
        %v561 = vld [vmem:[%s5 + $0x30] sm:$0xff]
        %v562 = vld [vmem:[%s5 + $0x38] sm:$0xff]
        %vm563 = vcmask 523264
        %v565 = vsel %vm563, %v523, 0
        %v568 = vsel %vm563, %v524, 0
        %v571 = vsel %vm563, %v525, 0
        %v574 = vsel %vm563, %v526, 0
        %v577 = vsel %vm563, %v527, 0
        %v580 = vsel %vm563, %v528, 0
        %v583 = vsel %vm563, %v529, 0
        %v586 = vsel %vm563, %v530, 0
        %v589 = vsel %vm563, %v531, 0
        %v592 = vsel %vm563, %v532, 0
        %v595 = vsel %vm563, %v533, 0
        %v598 = vsel %vm563, %v534, 0
        %v601 = vsel %vm563, %v535, 0
        %v604 = vsel %vm563, %v536, 0
        %v607 = vsel %vm563, %v537, 0
        %v610 = vsel %vm563, %v538, 0
        %v613 = vsel %vm563, %v539, 0
        %v616 = vsel %vm563, %v540, 0
        %v619 = vsel %vm563, %v541, 0
        %v622 = vsel %vm563, %v542, 0
        %v625 = vsel %vm563, %v543, 0
        %v628 = vsel %vm563, %v544, 0
        %v631 = vsel %vm563, %v545, 0
        %v634 = vsel %vm563, %v546, 0
        %v637 = vsel %vm563, %v547, 0
        %v640 = vsel %vm563, %v548, 0
        %v643 = vsel %vm563, %v549, 0
        %v646 = vsel %vm563, %v550, 0
        %v649 = vsel %vm563, %v551, 0
        %v652 = vsel %vm563, %v552, 0
        %v655 = vsel %vm563, %v553, 0
        %v658 = vsel %vm563, %v554, 0
        %660 = vmatprep.subr.mxu0 0.0
        %661 = vmatpush1.msra.mxu0 0.0
        %662 = vmatprep.subr.mxu0 0.0
        %663 = vmatpush1.msra.mxu0 0.0
        %664 = vmatprep.subr.mxu0 0.0
        %665 = vmatpush1.msra.mxu0 0.0
        %666 = vmatprep.subr.mxu0 0.0
        %667 = vmatpush1.msra.mxu0 0.0
        %668 = vmatprep.subr.mxu0 0.0
        %669 = vmatpush1.msra.mxu0 0.0
        %670 = vmatprep.subr.mxu0 0.0
        %671 = vmatpush1.msra.mxu0 0.0
        %672 = vmatprep.subr.mxu0 0.0
        %673 = vmatpush1.msra.mxu0 0.0
        %674 = vmatprep.subr.mxu0 0.0
        %675 = vmatpush1.msra.mxu0 0.0
        %676 = vmatprep.subr.mxu0 0.0
        %677 = vmatpush1.msra.mxu0 %v562
        %678 = vmatprep.subr.mxu0 0.0
        %679 = vmatpush1.msra.mxu0 %v561
        %680 = vmatprep.subr.mxu0 0.0
        %681 = vmatpush1.msra.mxu0 %v560
        %682 = vmatprep.subr.mxu0 0.0
        %683 = vmatpush1.msra.mxu0 %v559
        %684 = vmatprep.subr.mxu0 0.0
        %685 = vmatpush1.msra.mxu0 %v558
        %686 = vmatprep.subr.mxu0 0.0
        %687 = vmatpush1.msra.mxu0 %v557
        %688 = vmatprep.subr.mxu0 0.0
        %689 = vmatpush1.msra.mxu0 %v556
        %690 = vmatprep.subr.mxu0 0.0
        %691 = vmatpush1.msra.mxu0 %v555
        %692 = vmatprep.subr.mxu0 0.0
        %693 = vmatpush2.msra.mxu0 0.0
        %694 = vmatprep.subr.mxu0 0.0
        %695 = vmatpush2.msra.mxu0 0.0
        %696 = vmatprep.subr.mxu0 0.0
        %697 = vmatpush2.msra.mxu0 0.0
        %698 = vmatprep.subr.mxu0 0.0
        %699 = vmatpush2.msra.mxu0 0.0
        %700 = vmatprep.subr.mxu0 0.0
        %701 = vmatpush2.msra.mxu0 0.0
        %702 = vmatprep.subr.mxu0 0.0
        %703 = vmatpush2.msra.mxu0 0.0
        %704 = vmatprep.subr.mxu0 0.0
        %705 = vmatpush2.msra.mxu0 0.0
        %706 = vmatprep.subr.mxu0 0.0
        %707 = vmatpush2.msra.mxu0 0.0
        %708 = vmatprep.subr.mxu0 0.0
        %709 = vmatpush2.msra.mxu0 0.0
        %710 = vmatprep.subr.mxu0 0.0
        %711 = vmatpush2.msra.mxu0 0.0
        %712 = vmatprep.subr.mxu0 0.0
        %713 = vmatpush2.msra.mxu0 0.0
        %714 = vmatprep.subr.mxu0 0.0
        %715 = vmatpush2.msra.mxu0 0.0
        %716 = vmatprep.subr.mxu0 0.0
        %717 = vmatpush2.msra.mxu0 0.0
        %718 = vmatprep.subr.mxu0 0.0
        %719 = vmatpush2.msra.mxu0 0.0
        %720 = vmatprep.subr.mxu0 0.0
        %721 = vmatpush2.msra.mxu0 0.0
        %722 = vmatprep.subr.mxu0 0.0
        %723 = vmatpush2.msra.mxu0 0.0
        %724 = vmatprep.mubr.f32.mxu0 0.0
        %725 = vmatmul.mubr.f32.gmra.mxu0 %v565
        %v726 = vpop.f32.mrf.mxu0
        %v727 = vadd.f32 0.0, %v726
        %v728 = vpop.f32.mrf.mxu0
        %729 = vmatprep.mubr.f32.mxu0 0.0
        %730 = vmatmul.mubr.f32.gmra.mxu0 %v568
        %v731 = vpop.f32.mrf.mxu0
        %v732 = vadd.f32 0.0, %v731
        %v733 = vpop.f32.mrf.mxu0
        %734 = vmatprep.mubr.f32.mxu0 0.0
        %735 = vmatmul.mubr.f32.gmra.mxu0 %v571
        %v736 = vpop.f32.mrf.mxu0
        %v737 = vadd.f32 0.0, %v736
        %v738 = vpop.f32.mrf.mxu0
        %739 = vmatprep.mubr.f32.mxu0 0.0
        %740 = vmatmul.mubr.f32.gmra.mxu0 %v574
        %v741 = vpop.f32.mrf.mxu0
        %v742 = vadd.f32 0.0, %v741
        %v743 = vpop.f32.mrf.mxu0
        %744 = vmatprep.mubr.f32.mxu0 0.0
        %745 = vmatmul.mubr.f32.gmra.mxu0 %v577
        %v746 = vpop.f32.mrf.mxu0
        %v747 = vadd.f32 0.0, %v746
        %v748 = vpop.f32.mrf.mxu0
        %749 = vmatprep.mubr.f32.mxu0 0.0
        %750 = vmatmul.mubr.f32.gmra.mxu0 %v580
        %v751 = vpop.f32.mrf.mxu0
        %v752 = vadd.f32 0.0, %v751
        %v753 = vpop.f32.mrf.mxu0
        %754 = vmatprep.mubr.f32.mxu0 0.0
        %755 = vmatmul.mubr.f32.gmra.mxu0 %v583
        %v756 = vpop.f32.mrf.mxu0
        %v757 = vadd.f32 0.0, %v756
        %v758 = vpop.f32.mrf.mxu0
        %759 = vmatprep.mubr.f32.mxu0 0.0
        %760 = vmatmul.mubr.f32.gmra.mxu0 %v586
        %v761 = vpop.f32.mrf.mxu0
        %v762 = vadd.f32 0.0, %v761
        %v763 = vpop.f32.mrf.mxu0
        %764 = vmatprep.mubr.f32.mxu0 0.0
        %765 = vmatmul.mubr.f32.gmra.mxu0 %v589
        %v766 = vpop.f32.mrf.mxu0
        %v767 = vadd.f32 0.0, %v766
        %v768 = vpop.f32.mrf.mxu0
        %769 = vmatprep.mubr.f32.mxu0 0.0
        %770 = vmatmul.mubr.f32.gmra.mxu0 %v592
        %v771 = vpop.f32.mrf.mxu0
        %v772 = vadd.f32 0.0, %v771
        %v773 = vpop.f32.mrf.mxu0
        %774 = vmatprep.mubr.f32.mxu0 0.0
        %775 = vmatmul.mubr.f32.gmra.mxu0 %v595
        %v776 = vpop.f32.mrf.mxu0
        %v777 = vadd.f32 0.0, %v776
        %v778 = vpop.f32.mrf.mxu0
        %779 = vmatprep.mubr.f32.mxu0 0.0
        %780 = vmatmul.mubr.f32.gmra.mxu0 %v598
        %v781 = vpop.f32.mrf.mxu0
        %v782 = vadd.f32 0.0, %v781
        %v783 = vpop.f32.mrf.mxu0
        %784 = vmatprep.mubr.f32.mxu0 0.0
        %785 = vmatmul.mubr.f32.gmra.mxu0 %v601
        %v786 = vpop.f32.mrf.mxu0
        %v787 = vadd.f32 0.0, %v786
        %v788 = vpop.f32.mrf.mxu0
        %789 = vmatprep.mubr.f32.mxu0 0.0
        %790 = vmatmul.mubr.f32.gmra.mxu0 %v604
        %v791 = vpop.f32.mrf.mxu0
        %v792 = vadd.f32 0.0, %v791
        %v793 = vpop.f32.mrf.mxu0
        %794 = vmatprep.mubr.f32.mxu0 0.0
        %795 = vmatmul.mubr.f32.gmra.mxu0 %v607
        %v796 = vpop.f32.mrf.mxu0
        %v797 = vadd.f32 0.0, %v796
        %v798 = vpop.f32.mrf.mxu0
        %799 = vmatprep.mubr.f32.mxu0 0.0
        %800 = vmatmul.mubr.f32.gmra.mxu0 %v610
        %v801 = vpop.f32.mrf.mxu0
        %v802 = vadd.f32 0.0, %v801
        %v803 = vpop.f32.mrf.mxu0
        %804 = vmatprep.mubr.f32.mxu0 0.0
        %805 = vmatmul.mubr.f32.gmra.mxu0 %v613
        %v806 = vpop.f32.mrf.mxu0
        %v807 = vadd.f32 0.0, %v806
        %v808 = vpop.f32.mrf.mxu0
        %809 = vmatprep.mubr.f32.mxu0 0.0
        %810 = vmatmul.mubr.f32.gmra.mxu0 %v616
        %v811 = vpop.f32.mrf.mxu0
        %v812 = vadd.f32 0.0, %v811
        %v813 = vpop.f32.mrf.mxu0
        %814 = vmatprep.mubr.f32.mxu0 0.0
        %815 = vmatmul.mubr.f32.gmra.mxu0 %v619
        %v816 = vpop.f32.mrf.mxu0
        %v817 = vadd.f32 0.0, %v816
        %v818 = vpop.f32.mrf.mxu0
        %819 = vmatprep.mubr.f32.mxu0 0.0
        %820 = vmatmul.mubr.f32.gmra.mxu0 %v622
        %v821 = vpop.f32.mrf.mxu0
        %v822 = vadd.f32 0.0, %v821
        %v823 = vpop.f32.mrf.mxu0
        %824 = vmatprep.mubr.f32.mxu0 0.0
        %825 = vmatmul.mubr.f32.gmra.mxu0 %v625
        %v826 = vpop.f32.mrf.mxu0
        %v827 = vadd.f32 0.0, %v826
        %v828 = vpop.f32.mrf.mxu0
        %829 = vmatprep.mubr.f32.mxu0 0.0
        %830 = vmatmul.mubr.f32.gmra.mxu0 %v628
        %v831 = vpop.f32.mrf.mxu0
        %v832 = vadd.f32 0.0, %v831
        %v833 = vpop.f32.mrf.mxu0
        %834 = vmatprep.mubr.f32.mxu0 0.0
        %835 = vmatmul.mubr.f32.gmra.mxu0 %v631
        %v836 = vpop.f32.mrf.mxu0
        %v837 = vadd.f32 0.0, %v836
        %v838 = vpop.f32.mrf.mxu0
        %839 = vmatprep.mubr.f32.mxu0 0.0
        %840 = vmatmul.mubr.f32.gmra.mxu0 %v634
        %v841 = vpop.f32.mrf.mxu0
        %v842 = vadd.f32 0.0, %v841
        %v843 = vpop.f32.mrf.mxu0
        %844 = vmatprep.mubr.f32.mxu0 0.0
        %845 = vmatmul.mubr.f32.gmra.mxu0 %v637
        %v846 = vpop.f32.mrf.mxu0
        %v847 = vadd.f32 0.0, %v846
        %v848 = vpop.f32.mrf.mxu0
        %849 = vmatprep.mubr.f32.mxu0 0.0
        %850 = vmatmul.mubr.f32.gmra.mxu0 %v640
        %v851 = vpop.f32.mrf.mxu0
        %v852 = vadd.f32 0.0, %v851
        %v853 = vpop.f32.mrf.mxu0
        %854 = vmatprep.mubr.f32.mxu0 0.0
        %855 = vmatmul.mubr.f32.gmra.mxu0 %v643
        %v856 = vpop.f32.mrf.mxu0
        %v857 = vadd.f32 0.0, %v856
        %v858 = vpop.f32.mrf.mxu0
        %859 = vmatprep.mubr.f32.mxu0 0.0
        %860 = vmatmul.mubr.f32.gmra.mxu0 %v646
        %v861 = vpop.f32.mrf.mxu0
        %v862 = vadd.f32 0.0, %v861
        %v863 = vpop.f32.mrf.mxu0
        %864 = vmatprep.mubr.f32.mxu0 0.0
        %865 = vmatmul.mubr.f32.gmra.mxu0 %v649
        %v866 = vpop.f32.mrf.mxu0
        %v867 = vadd.f32 0.0, %v866
        %v868 = vpop.f32.mrf.mxu0
        %869 = vmatprep.mubr.f32.mxu0 0.0
        %870 = vmatmul.mubr.f32.gmra.mxu0 %v652
        %v871 = vpop.f32.mrf.mxu0
        %v872 = vadd.f32 0.0, %v871
        %v873 = vpop.f32.mrf.mxu0
        %874 = vmatprep.mubr.f32.mxu0 0.0
        %875 = vmatmul.mubr.f32.gmra.mxu0 %v655
        %v876 = vpop.f32.mrf.mxu0
        %v877 = vadd.f32 0.0, %v876
        %v878 = vpop.f32.mrf.mxu0
        %879 = vmatprep.mubr.f32.mxu0 0.0
        %880 = vmatmul.mubr.f32.gmra.mxu0 %v658
        %v881 = vpop.f32.mrf.mxu0
        %v882 = vadd.f32 0.0, %v881
        %v883 = vpop.f32.mrf.mxu0
        %884 = vdwg.mxu0
        %v885 = vld [vmem:[%s4] sm:$0xff]
        %v886 = vld [vmem:[%s4 + $0x8] sm:$0xff]
        %v888 = vsel %vm563, %v885, 0
        %v891 = vsel %vm563, %v886, 0
        %893 = vmatprep.subr.mxu0 0.0
        %894 = vmatpush1.msra.mxu0 0.0
        %895 = vmatprep.subr.mxu0 0.0
        %896 = vmatpush1.msra.mxu0 0.0
        %897 = vmatprep.subr.mxu0 0.0
        %898 = vmatpush1.msra.mxu0 0.0
        %899 = vmatprep.subr.mxu0 0.0
        %900 = vmatpush1.msra.mxu0 0.0
        %901 = vmatprep.subr.mxu0 0.0
        %902 = vmatpush1.msra.mxu0 0.0
        %903 = vmatprep.subr.mxu0 0.0
        %904 = vmatpush1.msra.mxu0 0.0
        %905 = vmatprep.subr.mxu0 0.0
        %906 = vmatpush1.msra.mxu0 0.0
        %907 = vmatprep.subr.mxu0 0.0
        %908 = vmatpush1.msra.mxu0 0.0
        %909 = vmatprep.subr.mxu0 0.0
        %910 = vmatpush1.msra.mxu0 %v762
        %911 = vmatprep.subr.mxu0 0.0
        %912 = vmatpush1.msra.mxu0 %v757
        %913 = vmatprep.subr.mxu0 0.0
        %914 = vmatpush1.msra.mxu0 %v752
        %915 = vmatprep.subr.mxu0 0.0
        %916 = vmatpush1.msra.mxu0 %v747
        %917 = vmatprep.subr.mxu0 0.0
        %918 = vmatpush1.msra.mxu0 %v742
        %919 = vmatprep.subr.mxu0 0.0
        %920 = vmatpush1.msra.mxu0 %v737
        %921 = vmatprep.subr.mxu0 0.0
        %922 = vmatpush1.msra.mxu0 %v732
        %923 = vmatprep.subr.mxu0 0.0
        %924 = vmatpush1.msra.mxu0 %v727
        %925 = vmatprep.subr.mxu0 0.0
        %926 = vmatpush2.msra.mxu0 0.0
        %927 = vmatprep.subr.mxu0 0.0
        %928 = vmatpush2.msra.mxu0 0.0
        %929 = vmatprep.subr.mxu0 0.0
        %930 = vmatpush2.msra.mxu0 0.0
        %931 = vmatprep.subr.mxu0 0.0
        %932 = vmatpush2.msra.mxu0 0.0
        %933 = vmatprep.subr.mxu0 0.0
        %934 = vmatpush2.msra.mxu0 0.0
        %935 = vmatprep.subr.mxu0 0.0
        %936 = vmatpush2.msra.mxu0 0.0
        %937 = vmatprep.subr.mxu0 0.0
        %938 = vmatpush2.msra.mxu0 0.0
        %939 = vmatprep.subr.mxu0 0.0
        %940 = vmatpush2.msra.mxu0 0.0
        %941 = vmatprep.subr.mxu0 0.0
        %942 = vmatpush2.msra.mxu0 0.0
        %943 = vmatprep.subr.mxu0 0.0
        %944 = vmatpush2.msra.mxu0 0.0
        %945 = vmatprep.subr.mxu0 0.0
        %946 = vmatpush2.msra.mxu0 0.0
        %947 = vmatprep.subr.mxu0 0.0
        %948 = vmatpush2.msra.mxu0 0.0
        %949 = vmatprep.subr.mxu0 0.0
        %950 = vmatpush2.msra.mxu0 0.0
        %951 = vmatprep.subr.mxu0 0.0
        %952 = vmatpush2.msra.mxu0 0.0
        %953 = vmatprep.subr.mxu0 0.0
        %954 = vmatpush2.msra.mxu0 0.0
        %955 = vmatprep.subr.mxu0 0.0
        %956 = vmatpush2.msra.mxu0 0.0
        %957 = vmatprep.mubr.f32.mxu0 0.0
        %958 = vmatmul.mubr.f32.gmra.mxu0 %v888
        %v959 = vpop.f32.mrf.mxu0
        %v960 = vadd.f32 0.0, %v959
        %v961 = vpop.f32.mrf.mxu0
        %962 = vmatprep.mubr.f32.mxu0 0.0
        %963 = vmatmul.mubr.f32.gmra.mxu0 %v891
        %v964 = vpop.f32.mrf.mxu0
        %v965 = vadd.f32 0.0, %v964
        %v966 = vpop.f32.mrf.mxu0
        %967 = vdwg.mxu0
        %968 = vmatprep.subr.mxu0 0.0
        %969 = vmatpush1.msra.mxu0 0.0
        %970 = vmatprep.subr.mxu0 0.0
        %971 = vmatpush1.msra.mxu0 0.0
        %972 = vmatprep.subr.mxu0 0.0
        %973 = vmatpush1.msra.mxu0 0.0
        %974 = vmatprep.subr.mxu0 0.0
        %975 = vmatpush1.msra.mxu0 0.0
        %976 = vmatprep.subr.mxu0 0.0
        %977 = vmatpush1.msra.mxu0 0.0
        %978 = vmatprep.subr.mxu0 0.0
        %979 = vmatpush1.msra.mxu0 0.0
        %980 = vmatprep.subr.mxu0 0.0
        %981 = vmatpush1.msra.mxu0 0.0
        %982 = vmatprep.subr.mxu0 0.0
        %983 = vmatpush1.msra.mxu0 0.0
        %984 = vmatprep.subr.mxu0 0.0
        %985 = vmatpush1.msra.mxu0 %v802
        %986 = vmatprep.subr.mxu0 0.0
        %987 = vmatpush1.msra.mxu0 %v797
        %988 = vmatprep.subr.mxu0 0.0
        %989 = vmatpush1.msra.mxu0 %v792
        %990 = vmatprep.subr.mxu0 0.0
        %991 = vmatpush1.msra.mxu0 %v787
        %992 = vmatprep.subr.mxu0 0.0
        %993 = vmatpush1.msra.mxu0 %v782
        %994 = vmatprep.subr.mxu0 0.0
        %995 = vmatpush1.msra.mxu0 %v777
        %996 = vmatprep.subr.mxu0 0.0
        %997 = vmatpush1.msra.mxu0 %v772
        %998 = vmatprep.subr.mxu0 0.0
        %999 = vmatpush1.msra.mxu0 %v767
        %1000 = vmatprep.subr.mxu0 0.0
        %1001 = vmatpush2.msra.mxu0 0.0
        %1002 = vmatprep.subr.mxu0 0.0
        %1003 = vmatpush2.msra.mxu0 0.0
        %1004 = vmatprep.subr.mxu0 0.0
        %1005 = vmatpush2.msra.mxu0 0.0
        %1006 = vmatprep.subr.mxu0 0.0
        %1007 = vmatpush2.msra.mxu0 0.0
        %1008 = vmatprep.subr.mxu0 0.0
        %1009 = vmatpush2.msra.mxu0 0.0
        %1010 = vmatprep.subr.mxu0 0.0
        %1011 = vmatpush2.msra.mxu0 0.0
        %1012 = vmatprep.subr.mxu0 0.0
        %1013 = vmatpush2.msra.mxu0 0.0
        %1014 = vmatprep.subr.mxu0 0.0
        %1015 = vmatpush2.msra.mxu0 0.0
        %1016 = vmatprep.subr.mxu0 0.0
        %1017 = vmatpush2.msra.mxu0 0.0
        %1018 = vmatprep.subr.mxu0 0.0
        %1019 = vmatpush2.msra.mxu0 0.0
        %1020 = vmatprep.subr.mxu0 0.0
        %1021 = vmatpush2.msra.mxu0 0.0
        %1022 = vmatprep.subr.mxu0 0.0
        %1023 = vmatpush2.msra.mxu0 0.0
        %1024 = vmatprep.subr.mxu0 0.0
        %1025 = vmatpush2.msra.mxu0 0.0
        %1026 = vmatprep.subr.mxu0 0.0
        %1027 = vmatpush2.msra.mxu0 0.0
        %1028 = vmatprep.subr.mxu0 0.0
        %1029 = vmatpush2.msra.mxu0 0.0
        %1030 = vmatprep.subr.mxu0 0.0
        %1031 = vmatpush2.msra.mxu0 0.0
        %1032 = vmatprep.mubr.f32.mxu0 0.0
        %1033 = vmatmul.mubr.f32.gmra.mxu0 %v888
        %v1034 = vpop.f32.mrf.mxu0
        %v1035 = vadd.f32 0.0, %v1034
        %v1036 = vpop.f32.mrf.mxu0
        %1037 = vmatprep.mubr.f32.mxu0 0.0
        %1038 = vmatmul.mubr.f32.gmra.mxu0 %v891
        %v1039 = vpop.f32.mrf.mxu0
        %v1040 = vadd.f32 0.0, %v1039
        %v1041 = vpop.f32.mrf.mxu0
        %1042 = vdwg.mxu0
        %1043 = vmatprep.subr.mxu0 0.0
        %1044 = vmatpush1.msra.mxu0 0.0
        %1045 = vmatprep.subr.mxu0 0.0
        %1046 = vmatpush1.msra.mxu0 0.0
        %1047 = vmatprep.subr.mxu0 0.0
        %1048 = vmatpush1.msra.mxu0 0.0
        %1049 = vmatprep.subr.mxu0 0.0
        %1050 = vmatpush1.msra.mxu0 0.0
        %1051 = vmatprep.subr.mxu0 0.0
        %1052 = vmatpush1.msra.mxu0 0.0
        %1053 = vmatprep.subr.mxu0 0.0
        %1054 = vmatpush1.msra.mxu0 0.0
        %1055 = vmatprep.subr.mxu0 0.0
        %1056 = vmatpush1.msra.mxu0 0.0
        %1057 = vmatprep.subr.mxu0 0.0
        %1058 = vmatpush1.msra.mxu0 0.0
        %1059 = vmatprep.subr.mxu0 0.0
        %1060 = vmatpush1.msra.mxu0 %v842
        %1061 = vmatprep.subr.mxu0 0.0
        %1062 = vmatpush1.msra.mxu0 %v837
        %1063 = vmatprep.subr.mxu0 0.0
        %1064 = vmatpush1.msra.mxu0 %v832
        %1065 = vmatprep.subr.mxu0 0.0
        %1066 = vmatpush1.msra.mxu0 %v827
        %1067 = vmatprep.subr.mxu0 0.0
        %1068 = vmatpush1.msra.mxu0 %v822
        %1069 = vmatprep.subr.mxu0 0.0
        %1070 = vmatpush1.msra.mxu0 %v817
        %1071 = vmatprep.subr.mxu0 0.0
        %1072 = vmatpush1.msra.mxu0 %v812
        %1073 = vmatprep.subr.mxu0 0.0
        %1074 = vmatpush1.msra.mxu0 %v807
        %1075 = vmatprep.subr.mxu0 0.0
        %1076 = vmatpush2.msra.mxu0 0.0
        %1077 = vmatprep.subr.mxu0 0.0
        %1078 = vmatpush2.msra.mxu0 0.0
        %1079 = vmatprep.subr.mxu0 0.0
        %1080 = vmatpush2.msra.mxu0 0.0
        %1081 = vmatprep.subr.mxu0 0.0
        %1082 = vmatpush2.msra.mxu0 0.0
        %1083 = vmatprep.subr.mxu0 0.0
        %1084 = vmatpush2.msra.mxu0 0.0
        %1085 = vmatprep.subr.mxu0 0.0
        %1086 = vmatpush2.msra.mxu0 0.0
        %1087 = vmatprep.subr.mxu0 0.0
        %1088 = vmatpush2.msra.mxu0 0.0
        %1089 = vmatprep.subr.mxu0 0.0
        %1090 = vmatpush2.msra.mxu0 0.0
        %1091 = vmatprep.subr.mxu0 0.0
        %1092 = vmatpush2.msra.mxu0 0.0
        %1093 = vmatprep.subr.mxu0 0.0
        %1094 = vmatpush2.msra.mxu0 0.0
        %1095 = vmatprep.subr.mxu0 0.0
        %1096 = vmatpush2.msra.mxu0 0.0
        %1097 = vmatprep.subr.mxu0 0.0
        %1098 = vmatpush2.msra.mxu0 0.0
        %1099 = vmatprep.subr.mxu0 0.0
        %1100 = vmatpush2.msra.mxu0 0.0
        %1101 = vmatprep.subr.mxu0 0.0
        %1102 = vmatpush2.msra.mxu0 0.0
        %1103 = vmatprep.subr.mxu0 0.0
        %1104 = vmatpush2.msra.mxu0 0.0
        %1105 = vmatprep.subr.mxu0 0.0
        %1106 = vmatpush2.msra.mxu0 0.0
        %1107 = vmatprep.mubr.f32.mxu0 0.0
        %1108 = vmatmul.mubr.f32.gmra.mxu0 %v888
        %v1109 = vpop.f32.mrf.mxu0
        %v1110 = vadd.f32 0.0, %v1109
        %v1111 = vpop.f32.mrf.mxu0
        %1112 = vmatprep.mubr.f32.mxu0 0.0
        %1113 = vmatmul.mubr.f32.gmra.mxu0 %v891
        %v1114 = vpop.f32.mrf.mxu0
        %v1115 = vadd.f32 0.0, %v1114
        %v1116 = vpop.f32.mrf.mxu0
        %1117 = vdwg.mxu0
        %1118 = vmatprep.subr.mxu0 0.0
        %1119 = vmatpush1.msra.mxu0 0.0
        %1120 = vmatprep.subr.mxu0 0.0
        %1121 = vmatpush1.msra.mxu0 0.0
        %1122 = vmatprep.subr.mxu0 0.0
        %1123 = vmatpush1.msra.mxu0 0.0
        %1124 = vmatprep.subr.mxu0 0.0
        %1125 = vmatpush1.msra.mxu0 0.0
        %1126 = vmatprep.subr.mxu0 0.0
        %1127 = vmatpush1.msra.mxu0 0.0
        %1128 = vmatprep.subr.mxu0 0.0
        %1129 = vmatpush1.msra.mxu0 0.0
        %1130 = vmatprep.subr.mxu0 0.0
        %1131 = vmatpush1.msra.mxu0 0.0
        %1132 = vmatprep.subr.mxu0 0.0
        %1133 = vmatpush1.msra.mxu0 0.0
        %1134 = vmatprep.subr.mxu0 0.0
        %1135 = vmatpush1.msra.mxu0 %v882
        %1136 = vmatprep.subr.mxu0 0.0
        %1137 = vmatpush1.msra.mxu0 %v877
        %1138 = vmatprep.subr.mxu0 0.0
        %1139 = vmatpush1.msra.mxu0 %v872
        %1140 = vmatprep.subr.mxu0 0.0
        %1141 = vmatpush1.msra.mxu0 %v867
        %1142 = vmatprep.subr.mxu0 0.0
        %1143 = vmatpush1.msra.mxu0 %v862
        %1144 = vmatprep.subr.mxu0 0.0
        %1145 = vmatpush1.msra.mxu0 %v857
        %1146 = vmatprep.subr.mxu0 0.0
        %1147 = vmatpush1.msra.mxu0 %v852
        %1148 = vmatprep.subr.mxu0 0.0
        %1149 = vmatpush1.msra.mxu0 %v847
        %1150 = vmatprep.subr.mxu0 0.0
        %1151 = vmatpush2.msra.mxu0 0.0
        %1152 = vmatprep.subr.mxu0 0.0
        %1153 = vmatpush2.msra.mxu0 0.0
        %1154 = vmatprep.subr.mxu0 0.0
        %1155 = vmatpush2.msra.mxu0 0.0
        %1156 = vmatprep.subr.mxu0 0.0
        %1157 = vmatpush2.msra.mxu0 0.0
        %1158 = vmatprep.subr.mxu0 0.0
        %1159 = vmatpush2.msra.mxu0 0.0
        %1160 = vmatprep.subr.mxu0 0.0
        %1161 = vmatpush2.msra.mxu0 0.0
        %1162 = vmatprep.subr.mxu0 0.0
        %1163 = vmatpush2.msra.mxu0 0.0
        %1164 = vmatprep.subr.mxu0 0.0
        %1165 = vmatpush2.msra.mxu0 0.0
        %1166 = vmatprep.subr.mxu0 0.0
        %1167 = vmatpush2.msra.mxu0 0.0
        %1168 = vmatprep.subr.mxu0 0.0
        %1169 = vmatpush2.msra.mxu0 0.0
        %1170 = vmatprep.subr.mxu0 0.0
        %1171 = vmatpush2.msra.mxu0 0.0
        %1172 = vmatprep.subr.mxu0 0.0
        %1173 = vmatpush2.msra.mxu0 0.0
        %1174 = vmatprep.subr.mxu0 0.0
        %1175 = vmatpush2.msra.mxu0 0.0
        %1176 = vmatprep.subr.mxu0 0.0
        %1177 = vmatpush2.msra.mxu0 0.0
        %1178 = vmatprep.subr.mxu0 0.0
        %1179 = vmatpush2.msra.mxu0 0.0
        %1180 = vmatprep.subr.mxu0 0.0
        %1181 = vmatpush2.msra.mxu0 0.0
        %1182 = vmatprep.mubr.f32.mxu0 0.0
        %1183 = vmatmul.mubr.f32.gmra.mxu0 %v888
        %v1184 = vpop.f32.mrf.mxu0
        %v1185 = vadd.f32 0.0, %v1184
        %v1186 = vpop.f32.mrf.mxu0
        %1187 = vmatprep.mubr.f32.mxu0 0.0
        %1188 = vmatmul.mubr.f32.gmra.mxu0 %v891
        %v1189 = vpop.f32.mrf.mxu0
        %v1190 = vadd.f32 0.0, %v1189
        %v1191 = vpop.f32.mrf.mxu0
        %1192 = vdwg.mxu0
        %s1193 = smul.u32 %s32, 4
        %s1194 = smul.u32 %s1193, 16
        %s1195 = scalar_lea.vmem %s522, %s1194
        %vm1196 = vcmask 130048
        %1197 = vst.msk [vmem:[%s1195] sm:$0xff] %vm1196, %v960
        %1198 = vst.msk [vmem:[%s1195 + $0x8] sm:$0xff] %vm1196, %v965
        %1199 = vst.msk [vmem:[%s1195 + $0x10] sm:$0xff] %vm1196, %v1035
        %1200 = vst.msk [vmem:[%s1195 + $0x18] sm:$0xff] %vm1196, %v1040
        %1201 = vst.msk [vmem:[%s1195 + $0x20] sm:$0xff] %vm1196, %v1110
        %1202 = vst.msk [vmem:[%s1195 + $0x28] sm:$0xff] %vm1196, %v1115
        %1203 = vst.msk [vmem:[%s1195 + $0x30] sm:$0xff] %vm1196, %v1185
        %1204 = vst.msk [vmem:[%s1195 + $0x38] sm:$0xff] %vm1196, %v1190
        %v1205 = vld [vmem:[%s440] sm:$0xff]
        %v1206 = vld [vmem:[%s440 + $0x8] sm:$0xff]
        %v1207 = vld [vmem:[%s440 + $0x10] sm:$0xff]
        %v1208 = vld [vmem:[%s440 + $0x18] sm:$0xff]
        %v1209 = vld [vmem:[%s440 + $0x20] sm:$0xff]
        %v1210 = vld [vmem:[%s440 + $0x28] sm:$0xff]
        %v1211 = vld [vmem:[%s440 + $0x30] sm:$0xff]
        %v1212 = vld [vmem:[%s440 + $0x38] sm:$0xff]
        %v1213 = vld [vmem:[%s440 + $0x40] sm:$0xff]
        %v1214 = vld [vmem:[%s440 + $0x48] sm:$0xff]
        %v1215 = vld [vmem:[%s440 + $0x50] sm:$0xff]
        %v1216 = vld [vmem:[%s440 + $0x58] sm:$0xff]
        %v1217 = vld [vmem:[%s440 + $0x60] sm:$0xff]
        %v1218 = vld [vmem:[%s440 + $0x68] sm:$0xff]
        %v1219 = vld [vmem:[%s440 + $0x70] sm:$0xff]
        %v1220 = vld [vmem:[%s440 + $0x78] sm:$0xff]
        %v1221 = vld [vmem:[%s7] sm:$0xff]
        %v1222 = vld [vmem:[%s7 + $0x8] sm:$0xff]
        %v1223 = vld [vmem:[%s7 + $0x10] sm:$0xff]
        %v1224 = vld [vmem:[%s7 + $0x18] sm:$0xff]
        %vm1225 = vcmask 261120
        %v1227 = vsel %vm1225, %v1205, 0
        %v1230 = vsel %vm1225, %v1206, 0
        %v1233 = vsel %vm1225, %v1207, 0
        %v1236 = vsel %vm1225, %v1208, 0
        %v1239 = vsel %vm1225, %v1209, 0
        %v1242 = vsel %vm1225, %v1210, 0
        %v1245 = vsel %vm1225, %v1211, 0
        %v1248 = vsel %vm1225, %v1212, 0
        %v1251 = vsel %vm1225, %v1213, 0
        %v1254 = vsel %vm1225, %v1214, 0
        %v1257 = vsel %vm1225, %v1215, 0
        %v1260 = vsel %vm1225, %v1216, 0
        %v1263 = vsel %vm1225, %v1217, 0
        %v1266 = vsel %vm1225, %v1218, 0
        %v1269 = vsel %vm1225, %v1219, 0
        %v1272 = vsel %vm1225, %v1220, 0
        %1274 = vmatprep.subr.mxu0 0.0
        %1275 = vmatpush1.msra.mxu0 0.0
        %1276 = vmatprep.subr.mxu0 0.0
        %1277 = vmatpush1.msra.mxu0 0.0
        %1278 = vmatprep.subr.mxu0 0.0
        %1279 = vmatpush1.msra.mxu0 0.0
        %1280 = vmatprep.subr.mxu0 0.0
        %1281 = vmatpush1.msra.mxu0 0.0
        %1282 = vmatprep.subr.mxu0 0.0
        %1283 = vmatpush1.msra.mxu0 0.0
        %1284 = vmatprep.subr.mxu0 0.0
        %1285 = vmatpush1.msra.mxu0 0.0
        %1286 = vmatprep.subr.mxu0 0.0
        %1287 = vmatpush1.msra.mxu0 0.0
        %1288 = vmatprep.subr.mxu0 0.0
        %1289 = vmatpush1.msra.mxu0 0.0
        %1290 = vmatprep.subr.mxu0 0.0
        %1291 = vmatpush1.msra.mxu0 0.0
        %1292 = vmatprep.subr.mxu0 0.0
        %1293 = vmatpush1.msra.mxu0 0.0
        %1294 = vmatprep.subr.mxu0 0.0
        %1295 = vmatpush1.msra.mxu0 0.0
        %1296 = vmatprep.subr.mxu0 0.0
        %1297 = vmatpush1.msra.mxu0 0.0
        %1298 = vmatprep.subr.mxu0 0.0
        %1299 = vmatpush1.msra.mxu0 %v1224
        %1300 = vmatprep.subr.mxu0 0.0
        %1301 = vmatpush1.msra.mxu0 %v1223
        %1302 = vmatprep.subr.mxu0 0.0
        %1303 = vmatpush1.msra.mxu0 %v1222
        %1304 = vmatprep.subr.mxu0 0.0
        %1305 = vmatpush1.msra.mxu0 %v1221
        %1306 = vmatprep.subr.mxu0 0.0
        %1307 = vmatpush2.msra.mxu0 0.0
        %1308 = vmatprep.subr.mxu0 0.0
        %1309 = vmatpush2.msra.mxu0 0.0
        %1310 = vmatprep.subr.mxu0 0.0
        %1311 = vmatpush2.msra.mxu0 0.0
        %1312 = vmatprep.subr.mxu0 0.0
        %1313 = vmatpush2.msra.mxu0 0.0
        %1314 = vmatprep.subr.mxu0 0.0
        %1315 = vmatpush2.msra.mxu0 0.0
        %1316 = vmatprep.subr.mxu0 0.0
        %1317 = vmatpush2.msra.mxu0 0.0
        %1318 = vmatprep.subr.mxu0 0.0
        %1319 = vmatpush2.msra.mxu0 0.0
        %1320 = vmatprep.subr.mxu0 0.0
        %1321 = vmatpush2.msra.mxu0 0.0
        %1322 = vmatprep.subr.mxu0 0.0
        %1323 = vmatpush2.msra.mxu0 0.0
        %1324 = vmatprep.subr.mxu0 0.0
        %1325 = vmatpush2.msra.mxu0 0.0
        %1326 = vmatprep.subr.mxu0 0.0
        %1327 = vmatpush2.msra.mxu0 0.0
        %1328 = vmatprep.subr.mxu0 0.0
        %1329 = vmatpush2.msra.mxu0 0.0
        %1330 = vmatprep.subr.mxu0 0.0
        %1331 = vmatpush2.msra.mxu0 0.0
        %1332 = vmatprep.subr.mxu0 0.0
        %1333 = vmatpush2.msra.mxu0 0.0
        %1334 = vmatprep.subr.mxu0 0.0
        %1335 = vmatpush2.msra.mxu0 0.0
        %1336 = vmatprep.subr.mxu0 0.0
        %1337 = vmatpush2.msra.mxu0 0.0
        %1338 = vmatprep.mubr.f32.mxu0 0.0
        %1339 = vmatmul.mubr.f32.gmra.mxu0 %v1227
        %v1340 = vpop.f32.mrf.mxu0
        %v1341 = vadd.f32 0.0, %v1340
        %v1342 = vpop.f32.mrf.mxu0
        %1343 = vmatprep.mubr.f32.mxu0 0.0
        %1344 = vmatmul.mubr.f32.gmra.mxu0 %v1230
        %v1345 = vpop.f32.mrf.mxu0
        %v1346 = vadd.f32 0.0, %v1345
        %v1347 = vpop.f32.mrf.mxu0
        %1348 = vmatprep.mubr.f32.mxu0 0.0
        %1349 = vmatmul.mubr.f32.gmra.mxu0 %v1233
        %v1350 = vpop.f32.mrf.mxu0
        %v1351 = vadd.f32 0.0, %v1350
        %v1352 = vpop.f32.mrf.mxu0
        %1353 = vmatprep.mubr.f32.mxu0 0.0
        %1354 = vmatmul.mubr.f32.gmra.mxu0 %v1236
        %v1355 = vpop.f32.mrf.mxu0
        %v1356 = vadd.f32 0.0, %v1355
        %v1357 = vpop.f32.mrf.mxu0
        %1358 = vmatprep.mubr.f32.mxu0 0.0
        %1359 = vmatmul.mubr.f32.gmra.mxu0 %v1239
        %v1360 = vpop.f32.mrf.mxu0
        %v1361 = vadd.f32 0.0, %v1360
        %v1362 = vpop.f32.mrf.mxu0
        %1363 = vmatprep.mubr.f32.mxu0 0.0
        %1364 = vmatmul.mubr.f32.gmra.mxu0 %v1242
        %v1365 = vpop.f32.mrf.mxu0
        %v1366 = vadd.f32 0.0, %v1365
        %v1367 = vpop.f32.mrf.mxu0
        %1368 = vmatprep.mubr.f32.mxu0 0.0
        %1369 = vmatmul.mubr.f32.gmra.mxu0 %v1245
        %v1370 = vpop.f32.mrf.mxu0
        %v1371 = vadd.f32 0.0, %v1370
        %v1372 = vpop.f32.mrf.mxu0
        %1373 = vmatprep.mubr.f32.mxu0 0.0
        %1374 = vmatmul.mubr.f32.gmra.mxu0 %v1248
        %v1375 = vpop.f32.mrf.mxu0
        %v1376 = vadd.f32 0.0, %v1375
        %v1377 = vpop.f32.mrf.mxu0
        %1378 = vmatprep.mubr.f32.mxu0 0.0
        %1379 = vmatmul.mubr.f32.gmra.mxu0 %v1251
        %v1380 = vpop.f32.mrf.mxu0
        %v1381 = vadd.f32 0.0, %v1380
        %v1382 = vpop.f32.mrf.mxu0
        %1383 = vmatprep.mubr.f32.mxu0 0.0
        %1384 = vmatmul.mubr.f32.gmra.mxu0 %v1254
        %v1385 = vpop.f32.mrf.mxu0
        %v1386 = vadd.f32 0.0, %v1385
        %v1387 = vpop.f32.mrf.mxu0
        %1388 = vmatprep.mubr.f32.mxu0 0.0
        %1389 = vmatmul.mubr.f32.gmra.mxu0 %v1257
        %v1390 = vpop.f32.mrf.mxu0
        %v1391 = vadd.f32 0.0, %v1390
        %v1392 = vpop.f32.mrf.mxu0
        %1393 = vmatprep.mubr.f32.mxu0 0.0
        %1394 = vmatmul.mubr.f32.gmra.mxu0 %v1260
        %v1395 = vpop.f32.mrf.mxu0
        %v1396 = vadd.f32 0.0, %v1395
        %v1397 = vpop.f32.mrf.mxu0
        %1398 = vmatprep.mubr.f32.mxu0 0.0
        %1399 = vmatmul.mubr.f32.gmra.mxu0 %v1263
        %v1400 = vpop.f32.mrf.mxu0
        %v1401 = vadd.f32 0.0, %v1400
        %v1402 = vpop.f32.mrf.mxu0
        %1403 = vmatprep.mubr.f32.mxu0 0.0
        %1404 = vmatmul.mubr.f32.gmra.mxu0 %v1266
        %v1405 = vpop.f32.mrf.mxu0
        %v1406 = vadd.f32 0.0, %v1405
        %v1407 = vpop.f32.mrf.mxu0
        %1408 = vmatprep.mubr.f32.mxu0 0.0
        %1409 = vmatmul.mubr.f32.gmra.mxu0 %v1269
        %v1410 = vpop.f32.mrf.mxu0
        %v1411 = vadd.f32 0.0, %v1410
        %v1412 = vpop.f32.mrf.mxu0
        %1413 = vmatprep.mubr.f32.mxu0 0.0
        %1414 = vmatmul.mubr.f32.gmra.mxu0 %v1272
        %v1415 = vpop.f32.mrf.mxu0
        %v1416 = vadd.f32 0.0, %v1415
        %v1417 = vpop.f32.mrf.mxu0
        %1418 = vdwg.mxu0
        %v1419 = vld [vmem:[%s6] sm:$0xff]
        %v1420 = vld [vmem:[%s6 + $0x8] sm:$0xff]
        %v1422 = vsel %vm1225, %v1419, 0
        %v1425 = vsel %vm1225, %v1420, 0
        %1427 = vmatprep.subr.mxu0 0.0
        %1428 = vmatpush1.msra.mxu0 0.0
        %1429 = vmatprep.subr.mxu0 0.0
        %1430 = vmatpush1.msra.mxu0 0.0
        %1431 = vmatprep.subr.mxu0 0.0
        %1432 = vmatpush1.msra.mxu0 0.0
        %1433 = vmatprep.subr.mxu0 0.0
        %1434 = vmatpush1.msra.mxu0 0.0
        %1435 = vmatprep.subr.mxu0 0.0
        %1436 = vmatpush1.msra.mxu0 0.0
        %1437 = vmatprep.subr.mxu0 0.0
        %1438 = vmatpush1.msra.mxu0 0.0
        %1439 = vmatprep.subr.mxu0 0.0
        %1440 = vmatpush1.msra.mxu0 0.0
        %1441 = vmatprep.subr.mxu0 0.0
        %1442 = vmatpush1.msra.mxu0 0.0
        %1443 = vmatprep.subr.mxu0 0.0
        %1444 = vmatpush1.msra.mxu0 0.0
        %1445 = vmatprep.subr.mxu0 0.0
        %1446 = vmatpush1.msra.mxu0 0.0
        %1447 = vmatprep.subr.mxu0 0.0
        %1448 = vmatpush1.msra.mxu0 0.0
        %1449 = vmatprep.subr.mxu0 0.0
        %1450 = vmatpush1.msra.mxu0 0.0
        %1451 = vmatprep.subr.mxu0 0.0
        %1452 = vmatpush1.msra.mxu0 %v1356
        %1453 = vmatprep.subr.mxu0 0.0
        %1454 = vmatpush1.msra.mxu0 %v1351
        %1455 = vmatprep.subr.mxu0 0.0
        %1456 = vmatpush1.msra.mxu0 %v1346
        %1457 = vmatprep.subr.mxu0 0.0
        %1458 = vmatpush1.msra.mxu0 %v1341
        %1459 = vmatprep.subr.mxu0 0.0
        %1460 = vmatpush2.msra.mxu0 0.0
        %1461 = vmatprep.subr.mxu0 0.0
        %1462 = vmatpush2.msra.mxu0 0.0
        %1463 = vmatprep.subr.mxu0 0.0
        %1464 = vmatpush2.msra.mxu0 0.0
        %1465 = vmatprep.subr.mxu0 0.0
        %1466 = vmatpush2.msra.mxu0 0.0
        %1467 = vmatprep.subr.mxu0 0.0
        %1468 = vmatpush2.msra.mxu0 0.0
        %1469 = vmatprep.subr.mxu0 0.0
        %1470 = vmatpush2.msra.mxu0 0.0
        %1471 = vmatprep.subr.mxu0 0.0
        %1472 = vmatpush2.msra.mxu0 0.0
        %1473 = vmatprep.subr.mxu0 0.0
        %1474 = vmatpush2.msra.mxu0 0.0
        %1475 = vmatprep.subr.mxu0 0.0
        %1476 = vmatpush2.msra.mxu0 0.0
        %1477 = vmatprep.subr.mxu0 0.0
        %1478 = vmatpush2.msra.mxu0 0.0
        %1479 = vmatprep.subr.mxu0 0.0
        %1480 = vmatpush2.msra.mxu0 0.0
        %1481 = vmatprep.subr.mxu0 0.0
        %1482 = vmatpush2.msra.mxu0 0.0
        %1483 = vmatprep.subr.mxu0 0.0
        %1484 = vmatpush2.msra.mxu0 0.0
        %1485 = vmatprep.subr.mxu0 0.0
        %1486 = vmatpush2.msra.mxu0 0.0
        %1487 = vmatprep.subr.mxu0 0.0
        %1488 = vmatpush2.msra.mxu0 0.0
        %1489 = vmatprep.subr.mxu0 0.0
        %1490 = vmatpush2.msra.mxu0 0.0
        %1491 = vmatprep.mubr.f32.mxu0 0.0
        %1492 = vmatmul.mubr.f32.gmra.mxu0 %v1422
        %v1493 = vpop.f32.mrf.mxu0
        %v1494 = vadd.f32 0.0, %v1493
        %v1495 = vpop.f32.mrf.mxu0
        %1496 = vmatprep.mubr.f32.mxu0 0.0
        %1497 = vmatmul.mubr.f32.gmra.mxu0 %v1425
        %v1498 = vpop.f32.mrf.mxu0
        %v1499 = vadd.f32 0.0, %v1498
        %v1500 = vpop.f32.mrf.mxu0
        %1501 = vdwg.mxu0
        %1502 = vmatprep.subr.mxu0 0.0
        %1503 = vmatpush1.msra.mxu0 0.0
        %1504 = vmatprep.subr.mxu0 0.0
        %1505 = vmatpush1.msra.mxu0 0.0
        %1506 = vmatprep.subr.mxu0 0.0
        %1507 = vmatpush1.msra.mxu0 0.0
        %1508 = vmatprep.subr.mxu0 0.0
        %1509 = vmatpush1.msra.mxu0 0.0
        %1510 = vmatprep.subr.mxu0 0.0
        %1511 = vmatpush1.msra.mxu0 0.0
        %1512 = vmatprep.subr.mxu0 0.0
        %1513 = vmatpush1.msra.mxu0 0.0
        %1514 = vmatprep.subr.mxu0 0.0
        %1515 = vmatpush1.msra.mxu0 0.0
        %1516 = vmatprep.subr.mxu0 0.0
        %1517 = vmatpush1.msra.mxu0 0.0
        %1518 = vmatprep.subr.mxu0 0.0
        %1519 = vmatpush1.msra.mxu0 0.0
        %1520 = vmatprep.subr.mxu0 0.0
        %1521 = vmatpush1.msra.mxu0 0.0
        %1522 = vmatprep.subr.mxu0 0.0
        %1523 = vmatpush1.msra.mxu0 0.0
        %1524 = vmatprep.subr.mxu0 0.0
        %1525 = vmatpush1.msra.mxu0 0.0
        %1526 = vmatprep.subr.mxu0 0.0
        %1527 = vmatpush1.msra.mxu0 %v1376
        %1528 = vmatprep.subr.mxu0 0.0
        %1529 = vmatpush1.msra.mxu0 %v1371
        %1530 = vmatprep.subr.mxu0 0.0
        %1531 = vmatpush1.msra.mxu0 %v1366
        %1532 = vmatprep.subr.mxu0 0.0
        %1533 = vmatpush1.msra.mxu0 %v1361
        %1534 = vmatprep.subr.mxu0 0.0
        %1535 = vmatpush2.msra.mxu0 0.0
        %1536 = vmatprep.subr.mxu0 0.0
        %1537 = vmatpush2.msra.mxu0 0.0
        %1538 = vmatprep.subr.mxu0 0.0
        %1539 = vmatpush2.msra.mxu0 0.0
        %1540 = vmatprep.subr.mxu0 0.0
        %1541 = vmatpush2.msra.mxu0 0.0
        %1542 = vmatprep.subr.mxu0 0.0
        %1543 = vmatpush2.msra.mxu0 0.0
        %1544 = vmatprep.subr.mxu0 0.0
        %1545 = vmatpush2.msra.mxu0 0.0
        %1546 = vmatprep.subr.mxu0 0.0
        %1547 = vmatpush2.msra.mxu0 0.0
        %1548 = vmatprep.subr.mxu0 0.0
        %1549 = vmatpush2.msra.mxu0 0.0
        %1550 = vmatprep.subr.mxu0 0.0
        %1551 = vmatpush2.msra.mxu0 0.0
        %1552 = vmatprep.subr.mxu0 0.0
        %1553 = vmatpush2.msra.mxu0 0.0
        %1554 = vmatprep.subr.mxu0 0.0
        %1555 = vmatpush2.msra.mxu0 0.0
        %1556 = vmatprep.subr.mxu0 0.0
        %1557 = vmatpush2.msra.mxu0 0.0
        %1558 = vmatprep.subr.mxu0 0.0
        %1559 = vmatpush2.msra.mxu0 0.0
        %1560 = vmatprep.subr.mxu0 0.0
        %1561 = vmatpush2.msra.mxu0 0.0
        %1562 = vmatprep.subr.mxu0 0.0
        %1563 = vmatpush2.msra.mxu0 0.0
        %1564 = vmatprep.subr.mxu0 0.0
        %1565 = vmatpush2.msra.mxu0 0.0
        %1566 = vmatprep.mubr.f32.mxu0 0.0
        %1567 = vmatmul.mubr.f32.gmra.mxu0 %v1422
        %v1568 = vpop.f32.mrf.mxu0
        %v1569 = vadd.f32 0.0, %v1568
        %v1570 = vpop.f32.mrf.mxu0
        %1571 = vmatprep.mubr.f32.mxu0 0.0
        %1572 = vmatmul.mubr.f32.gmra.mxu0 %v1425
        %v1573 = vpop.f32.mrf.mxu0
        %v1574 = vadd.f32 0.0, %v1573
        %v1575 = vpop.f32.mrf.mxu0
        %1576 = vdwg.mxu0
        %1577 = vmatprep.subr.mxu0 0.0
        %1578 = vmatpush1.msra.mxu0 0.0
        %1579 = vmatprep.subr.mxu0 0.0
        %1580 = vmatpush1.msra.mxu0 0.0
        %1581 = vmatprep.subr.mxu0 0.0
        %1582 = vmatpush1.msra.mxu0 0.0
        %1583 = vmatprep.subr.mxu0 0.0
        %1584 = vmatpush1.msra.mxu0 0.0
        %1585 = vmatprep.subr.mxu0 0.0
        %1586 = vmatpush1.msra.mxu0 0.0
        %1587 = vmatprep.subr.mxu0 0.0
        %1588 = vmatpush1.msra.mxu0 0.0
        %1589 = vmatprep.subr.mxu0 0.0
        %1590 = vmatpush1.msra.mxu0 0.0
        %1591 = vmatprep.subr.mxu0 0.0
        %1592 = vmatpush1.msra.mxu0 0.0
        %1593 = vmatprep.subr.mxu0 0.0
        %1594 = vmatpush1.msra.mxu0 0.0
        %1595 = vmatprep.subr.mxu0 0.0
        %1596 = vmatpush1.msra.mxu0 0.0
        %1597 = vmatprep.subr.mxu0 0.0
        %1598 = vmatpush1.msra.mxu0 0.0
        %1599 = vmatprep.subr.mxu0 0.0
        %1600 = vmatpush1.msra.mxu0 0.0
        %1601 = vmatprep.subr.mxu0 0.0
        %1602 = vmatpush1.msra.mxu0 %v1396
        %1603 = vmatprep.subr.mxu0 0.0
        %1604 = vmatpush1.msra.mxu0 %v1391
        %1605 = vmatprep.subr.mxu0 0.0
        %1606 = vmatpush1.msra.mxu0 %v1386
        %1607 = vmatprep.subr.mxu0 0.0
        %1608 = vmatpush1.msra.mxu0 %v1381
        %1609 = vmatprep.subr.mxu0 0.0
        %1610 = vmatpush2.msra.mxu0 0.0
        %1611 = vmatprep.subr.mxu0 0.0
        %1612 = vmatpush2.msra.mxu0 0.0
        %1613 = vmatprep.subr.mxu0 0.0
        %1614 = vmatpush2.msra.mxu0 0.0
        %1615 = vmatprep.subr.mxu0 0.0
        %1616 = vmatpush2.msra.mxu0 0.0
        %1617 = vmatprep.subr.mxu0 0.0
        %1618 = vmatpush2.msra.mxu0 0.0
        %1619 = vmatprep.subr.mxu0 0.0
        %1620 = vmatpush2.msra.mxu0 0.0
        %1621 = vmatprep.subr.mxu0 0.0
        %1622 = vmatpush2.msra.mxu0 0.0
        %1623 = vmatprep.subr.mxu0 0.0
        %1624 = vmatpush2.msra.mxu0 0.0
        %1625 = vmatprep.subr.mxu0 0.0
        %1626 = vmatpush2.msra.mxu0 0.0
        %1627 = vmatprep.subr.mxu0 0.0
        %1628 = vmatpush2.msra.mxu0 0.0
        %1629 = vmatprep.subr.mxu0 0.0
        %1630 = vmatpush2.msra.mxu0 0.0
        %1631 = vmatprep.subr.mxu0 0.0
        %1632 = vmatpush2.msra.mxu0 0.0
        %1633 = vmatprep.subr.mxu0 0.0
        %1634 = vmatpush2.msra.mxu0 0.0
        %1635 = vmatprep.subr.mxu0 0.0
        %1636 = vmatpush2.msra.mxu0 0.0
        %1637 = vmatprep.subr.mxu0 0.0
        %1638 = vmatpush2.msra.mxu0 0.0
        %1639 = vmatprep.subr.mxu0 0.0
        %1640 = vmatpush2.msra.mxu0 0.0
        %1641 = vmatprep.mubr.f32.mxu0 0.0
        %1642 = vmatmul.mubr.f32.gmra.mxu0 %v1422
        %v1643 = vpop.f32.mrf.mxu0
        %v1644 = vadd.f32 0.0, %v1643
        %v1645 = vpop.f32.mrf.mxu0
        %1646 = vmatprep.mubr.f32.mxu0 0.0
        %1647 = vmatmul.mubr.f32.gmra.mxu0 %v1425
        %v1648 = vpop.f32.mrf.mxu0
        %v1649 = vadd.f32 0.0, %v1648
        %v1650 = vpop.f32.mrf.mxu0
        %1651 = vdwg.mxu0
        %1652 = vmatprep.subr.mxu0 0.0
        %1653 = vmatpush1.msra.mxu0 0.0
        %1654 = vmatprep.subr.mxu0 0.0
        %1655 = vmatpush1.msra.mxu0 0.0
        %1656 = vmatprep.subr.mxu0 0.0
        %1657 = vmatpush1.msra.mxu0 0.0
        %1658 = vmatprep.subr.mxu0 0.0
        %1659 = vmatpush1.msra.mxu0 0.0
        %1660 = vmatprep.subr.mxu0 0.0
        %1661 = vmatpush1.msra.mxu0 0.0
        %1662 = vmatprep.subr.mxu0 0.0
        %1663 = vmatpush1.msra.mxu0 0.0
        %1664 = vmatprep.subr.mxu0 0.0
        %1665 = vmatpush1.msra.mxu0 0.0
        %1666 = vmatprep.subr.mxu0 0.0
        %1667 = vmatpush1.msra.mxu0 0.0
        %1668 = vmatprep.subr.mxu0 0.0
        %1669 = vmatpush1.msra.mxu0 0.0
        %1670 = vmatprep.subr.mxu0 0.0
        %1671 = vmatpush1.msra.mxu0 0.0
        %1672 = vmatprep.subr.mxu0 0.0
        %1673 = vmatpush1.msra.mxu0 0.0
        %1674 = vmatprep.subr.mxu0 0.0
        %1675 = vmatpush1.msra.mxu0 0.0
        %1676 = vmatprep.subr.mxu0 0.0
        %1677 = vmatpush1.msra.mxu0 %v1416
        %1678 = vmatprep.subr.mxu0 0.0
        %1679 = vmatpush1.msra.mxu0 %v1411
        %1680 = vmatprep.subr.mxu0 0.0
        %1681 = vmatpush1.msra.mxu0 %v1406
        %1682 = vmatprep.subr.mxu0 0.0
        %1683 = vmatpush1.msra.mxu0 %v1401
        %1684 = vmatprep.subr.mxu0 0.0
        %1685 = vmatpush2.msra.mxu0 0.0
        %1686 = vmatprep.subr.mxu0 0.0
        %1687 = vmatpush2.msra.mxu0 0.0
        %1688 = vmatprep.subr.mxu0 0.0
        %1689 = vmatpush2.msra.mxu0 0.0
        %1690 = vmatprep.subr.mxu0 0.0
        %1691 = vmatpush2.msra.mxu0 0.0
        %1692 = vmatprep.subr.mxu0 0.0
        %1693 = vmatpush2.msra.mxu0 0.0
        %1694 = vmatprep.subr.mxu0 0.0
        %1695 = vmatpush2.msra.mxu0 0.0
        %1696 = vmatprep.subr.mxu0 0.0
        %1697 = vmatpush2.msra.mxu0 0.0
        %1698 = vmatprep.subr.mxu0 0.0
        %1699 = vmatpush2.msra.mxu0 0.0
        %1700 = vmatprep.subr.mxu0 0.0
        %1701 = vmatpush2.msra.mxu0 0.0
        %1702 = vmatprep.subr.mxu0 0.0
        %1703 = vmatpush2.msra.mxu0 0.0
        %1704 = vmatprep.subr.mxu0 0.0
        %1705 = vmatpush2.msra.mxu0 0.0
        %1706 = vmatprep.subr.mxu0 0.0
        %1707 = vmatpush2.msra.mxu0 0.0
        %1708 = vmatprep.subr.mxu0 0.0
        %1709 = vmatpush2.msra.mxu0 0.0
        %1710 = vmatprep.subr.mxu0 0.0
        %1711 = vmatpush2.msra.mxu0 0.0
        %1712 = vmatprep.subr.mxu0 0.0
        %1713 = vmatpush2.msra.mxu0 0.0
        %1714 = vmatprep.subr.mxu0 0.0
        %1715 = vmatpush2.msra.mxu0 0.0
        %1716 = vmatprep.mubr.f32.mxu0 0.0
        %1717 = vmatmul.mubr.f32.gmra.mxu0 %v1422
        %v1718 = vpop.f32.mrf.mxu0
        %v1719 = vadd.f32 0.0, %v1718
        %v1720 = vpop.f32.mrf.mxu0
        %1721 = vmatprep.mubr.f32.mxu0 0.0
        %1722 = vmatmul.mubr.f32.gmra.mxu0 %v1425
        %v1723 = vpop.f32.mrf.mxu0
        %v1724 = vadd.f32 0.0, %v1723
        %v1725 = vpop.f32.mrf.mxu0
        %1726 = vdwg.mxu0
        %s1727 = sadd.s32 %s1193, 4
        %s1728 = smul.u32 %s1727, 16
        %s1729 = scalar_lea.vmem %s522, %s1728
        %1730 = vst.msk [vmem:[%s1729] sm:$0xff] %vm1196, %v1494
        %1731 = vst.msk [vmem:[%s1729 + $0x8] sm:$0xff] %vm1196, %v1499
        %1732 = vst.msk [vmem:[%s1729 + $0x10] sm:$0xff] %vm1196, %v1569
        %1733 = vst.msk [vmem:[%s1729 + $0x18] sm:$0xff] %vm1196, %v1574
        %1734 = vst.msk [vmem:[%s1729 + $0x20] sm:$0xff] %vm1196, %v1644
        %1735 = vst.msk [vmem:[%s1729 + $0x28] sm:$0xff] %vm1196, %v1649
        %1736 = vst.msk [vmem:[%s1729 + $0x30] sm:$0xff] %vm1196, %v1719
        %1737 = vst.msk [vmem:[%s1729 + $0x38] sm:$0xff] %vm1196, %v1724
        %v1738 = vld [vmem:[%s449] sm:$0xff]
        %v1739 = vld [vmem:[%s449 + $0x8] sm:$0xff]
        %v1740 = vld [vmem:[%s449 + $0x10] sm:$0xff]
        %v1741 = vld [vmem:[%s449 + $0x18] sm:$0xff]
        %v1742 = vld [vmem:[%s449 + $0x20] sm:$0xff]
        %v1743 = vld [vmem:[%s449 + $0x28] sm:$0xff]
        %v1744 = vld [vmem:[%s449 + $0x30] sm:$0xff]
        %v1745 = vld [vmem:[%s449 + $0x38] sm:$0xff]
        %v1746 = vld [vmem:[%s449 + $0x40] sm:$0xff]
        %v1747 = vld [vmem:[%s449 + $0x48] sm:$0xff]
        %v1748 = vld [vmem:[%s449 + $0x50] sm:$0xff]
        %v1749 = vld [vmem:[%s449 + $0x58] sm:$0xff]
        %v1750 = vld [vmem:[%s449 + $0x60] sm:$0xff]
        %v1751 = vld [vmem:[%s449 + $0x68] sm:$0xff]
        %v1752 = vld [vmem:[%s449 + $0x70] sm:$0xff]
        %v1753 = vld [vmem:[%s449 + $0x78] sm:$0xff]
        %s1754 = smul.u32 %s32, 8
        %s1755 = sadd.s32 %s1754, 8
        %s1756 = smul.u32 %s1755, 16
        %s1757 = scalar_lea.vmem %s522, %s1756
        %1758 = vst.msk [vmem:[%s1757] sm:$0xff] %vm1196, %v1738
        %1759 = vst.msk [vmem:[%s1757 + $0x8] sm:$0xff] %vm1196, %v1739
        %1760 = vst.msk [vmem:[%s1757 + $0x10] sm:$0xff] %vm1196, %v1740
        %1761 = vst.msk [vmem:[%s1757 + $0x18] sm:$0xff] %vm1196, %v1741
        %1762 = vst.msk [vmem:[%s1757 + $0x20] sm:$0xff] %vm1196, %v1742
        %1763 = vst.msk [vmem:[%s1757 + $0x28] sm:$0xff] %vm1196, %v1743
        %1764 = vst.msk [vmem:[%s1757 + $0x30] sm:$0xff] %vm1196, %v1744
        %1765 = vst.msk [vmem:[%s1757 + $0x38] sm:$0xff] %vm1196, %v1745
        %1766 = vst.msk [vmem:[%s1757 + $0x40] sm:$0xff] %vm1196, %v1746
        %1767 = vst.msk [vmem:[%s1757 + $0x48] sm:$0xff] %vm1196, %v1747
        %1768 = vst.msk [vmem:[%s1757 + $0x50] sm:$0xff] %vm1196, %v1748
        %1769 = vst.msk [vmem:[%s1757 + $0x58] sm:$0xff] %vm1196, %v1749
        %1770 = vst.msk [vmem:[%s1757 + $0x60] sm:$0xff] %vm1196, %v1750
        %1771 = vst.msk [vmem:[%s1757 + $0x68] sm:$0xff] %vm1196, %v1751
        %1772 = vst.msk [vmem:[%s1757 + $0x70] sm:$0xff] %vm1196, %v1752
        %1773 = vst.msk [vmem:[%s1757 + $0x78] sm:$0xff] %vm1196, %v1753
        %v1774 = vld [vmem:[%s516] sm:$0xff]
        %v1775 = vld [vmem:[%s516 + $0x8] sm:$0xff]
        %v1776 = vld [vmem:[%s516 + $0x10] sm:$0xff]
        %v1777 = vld [vmem:[%s516 + $0x18] sm:$0xff]
        %v1778 = vld [vmem:[%s9] sm:$0xff]
        %vm1779 = vcmask 64512
        %v1781 = vsel %vm1779, %v1774, 0
        %v1784 = vsel %vm1779, %v1775, 0
        %v1787 = vsel %vm1779, %v1776, 0
        %v1790 = vsel %vm1779, %v1777, 0
        %1792 = vmatprep.subr.mxu0 0.0
        %1793 = vmatpush1.msra.mxu0 0.0
        %1794 = vmatprep.subr.mxu0 0.0
        %1795 = vmatpush1.msra.mxu0 0.0
        %1796 = vmatprep.subr.mxu0 0.0
        %1797 = vmatpush1.msra.mxu0 0.0
        %1798 = vmatprep.subr.mxu0 0.0
        %1799 = vmatpush1.msra.mxu0 0.0
        %1800 = vmatprep.subr.mxu0 0.0
        %1801 = vmatpush1.msra.mxu0 0.0
        %1802 = vmatprep.subr.mxu0 0.0
        %1803 = vmatpush1.msra.mxu0 0.0
        %1804 = vmatprep.subr.mxu0 0.0
        %1805 = vmatpush1.msra.mxu0 0.0
        %1806 = vmatprep.subr.mxu0 0.0
        %1807 = vmatpush1.msra.mxu0 0.0
        %1808 = vmatprep.subr.mxu0 0.0
        %1809 = vmatpush1.msra.mxu0 0.0
        %1810 = vmatprep.subr.mxu0 0.0
        %1811 = vmatpush1.msra.mxu0 0.0
        %1812 = vmatprep.subr.mxu0 0.0
        %1813 = vmatpush1.msra.mxu0 0.0
        %1814 = vmatprep.subr.mxu0 0.0
        %1815 = vmatpush1.msra.mxu0 0.0
        %1816 = vmatprep.subr.mxu0 0.0
        %1817 = vmatpush1.msra.mxu0 0.0
        %1818 = vmatprep.subr.mxu0 0.0
        %1819 = vmatpush1.msra.mxu0 0.0
        %1820 = vmatprep.subr.mxu0 0.0
        %1821 = vmatpush1.msra.mxu0 0.0
        %1822 = vmatprep.subr.mxu0 0.0
        %1823 = vmatpush1.msra.mxu0 %v1778
        %1824 = vmatprep.subr.mxu0 0.0
        %1825 = vmatpush2.msra.mxu0 0.0
        %1826 = vmatprep.subr.mxu0 0.0
        %1827 = vmatpush2.msra.mxu0 0.0
        %1828 = vmatprep.subr.mxu0 0.0
        %1829 = vmatpush2.msra.mxu0 0.0
        %1830 = vmatprep.subr.mxu0 0.0
        %1831 = vmatpush2.msra.mxu0 0.0
        %1832 = vmatprep.subr.mxu0 0.0
        %1833 = vmatpush2.msra.mxu0 0.0
        %1834 = vmatprep.subr.mxu0 0.0
        %1835 = vmatpush2.msra.mxu0 0.0
        %1836 = vmatprep.subr.mxu0 0.0
        %1837 = vmatpush2.msra.mxu0 0.0
        %1838 = vmatprep.subr.mxu0 0.0
        %1839 = vmatpush2.msra.mxu0 0.0
        %1840 = vmatprep.subr.mxu0 0.0
        %1841 = vmatpush2.msra.mxu0 0.0
        %1842 = vmatprep.subr.mxu0 0.0
        %1843 = vmatpush2.msra.mxu0 0.0
        %1844 = vmatprep.subr.mxu0 0.0
        %1845 = vmatpush2.msra.mxu0 0.0
        %1846 = vmatprep.subr.mxu0 0.0
        %1847 = vmatpush2.msra.mxu0 0.0
        %1848 = vmatprep.subr.mxu0 0.0
        %1849 = vmatpush2.msra.mxu0 0.0
        %1850 = vmatprep.subr.mxu0 0.0
        %1851 = vmatpush2.msra.mxu0 0.0
        %1852 = vmatprep.subr.mxu0 0.0
        %1853 = vmatpush2.msra.mxu0 0.0
        %1854 = vmatprep.subr.mxu0 0.0
        %1855 = vmatpush2.msra.mxu0 0.0
        %1856 = vmatprep.mubr.f32.mxu0 0.0
        %1857 = vmatmul.mubr.f32.gmra.mxu0 %v1781
        %v1858 = vpop.f32.mrf.mxu0
        %v1859 = vadd.f32 0.0, %v1858
        %v1860 = vpop.f32.mrf.mxu0
        %1861 = vmatprep.mubr.f32.mxu0 0.0
        %1862 = vmatmul.mubr.f32.gmra.mxu0 %v1784
        %v1863 = vpop.f32.mrf.mxu0
        %v1864 = vadd.f32 0.0, %v1863
        %v1865 = vpop.f32.mrf.mxu0
        %1866 = vmatprep.mubr.f32.mxu0 0.0
        %1867 = vmatmul.mubr.f32.gmra.mxu0 %v1787
        %v1868 = vpop.f32.mrf.mxu0
        %v1869 = vadd.f32 0.0, %v1868
        %v1870 = vpop.f32.mrf.mxu0
        %1871 = vmatprep.mubr.f32.mxu0 0.0
        %1872 = vmatmul.mubr.f32.gmra.mxu0 %v1790
        %v1873 = vpop.f32.mrf.mxu0
        %v1874 = vadd.f32 0.0, %v1873
        %v1875 = vpop.f32.mrf.mxu0
        %1876 = vdwg.mxu0
        %v1877 = vld [vmem:[%s8] sm:$0xff]
        %v1878 = vld [vmem:[%s8 + $0x8] sm:$0xff]
        %v1880 = vsel %vm1779, %v1877, 0
        %v1883 = vsel %vm1779, %v1878, 0
        %1885 = vmatprep.subr.mxu0 0.0
        %1886 = vmatpush1.msra.mxu0 0.0
        %1887 = vmatprep.subr.mxu0 0.0
        %1888 = vmatpush1.msra.mxu0 0.0
        %1889 = vmatprep.subr.mxu0 0.0
        %1890 = vmatpush1.msra.mxu0 0.0
        %1891 = vmatprep.subr.mxu0 0.0
        %1892 = vmatpush1.msra.mxu0 0.0
        %1893 = vmatprep.subr.mxu0 0.0
        %1894 = vmatpush1.msra.mxu0 0.0
        %1895 = vmatprep.subr.mxu0 0.0
        %1896 = vmatpush1.msra.mxu0 0.0
        %1897 = vmatprep.subr.mxu0 0.0
        %1898 = vmatpush1.msra.mxu0 0.0
        %1899 = vmatprep.subr.mxu0 0.0
        %1900 = vmatpush1.msra.mxu0 0.0
        %1901 = vmatprep.subr.mxu0 0.0
        %1902 = vmatpush1.msra.mxu0 0.0
        %1903 = vmatprep.subr.mxu0 0.0
        %1904 = vmatpush1.msra.mxu0 0.0
        %1905 = vmatprep.subr.mxu0 0.0
        %1906 = vmatpush1.msra.mxu0 0.0
        %1907 = vmatprep.subr.mxu0 0.0
        %1908 = vmatpush1.msra.mxu0 0.0
        %1909 = vmatprep.subr.mxu0 0.0
        %1910 = vmatpush1.msra.mxu0 0.0
        %1911 = vmatprep.subr.mxu0 0.0
        %1912 = vmatpush1.msra.mxu0 0.0
        %1913 = vmatprep.subr.mxu0 0.0
        %1914 = vmatpush1.msra.mxu0 0.0
        %1915 = vmatprep.subr.mxu0 0.0
        %1916 = vmatpush1.msra.mxu0 %v1859
        %1917 = vmatprep.subr.mxu0 0.0
        %1918 = vmatpush2.msra.mxu0 0.0
        %1919 = vmatprep.subr.mxu0 0.0
        %1920 = vmatpush2.msra.mxu0 0.0
        %1921 = vmatprep.subr.mxu0 0.0
        %1922 = vmatpush2.msra.mxu0 0.0
        %1923 = vmatprep.subr.mxu0 0.0
        %1924 = vmatpush2.msra.mxu0 0.0
        %1925 = vmatprep.subr.mxu0 0.0
        %1926 = vmatpush2.msra.mxu0 0.0
        %1927 = vmatprep.subr.mxu0 0.0
        %1928 = vmatpush2.msra.mxu0 0.0
        %1929 = vmatprep.subr.mxu0 0.0
        %1930 = vmatpush2.msra.mxu0 0.0
        %1931 = vmatprep.subr.mxu0 0.0
        %1932 = vmatpush2.msra.mxu0 0.0
        %1933 = vmatprep.subr.mxu0 0.0
        %1934 = vmatpush2.msra.mxu0 0.0
        %1935 = vmatprep.subr.mxu0 0.0
        %1936 = vmatpush2.msra.mxu0 0.0
        %1937 = vmatprep.subr.mxu0 0.0
        %1938 = vmatpush2.msra.mxu0 0.0
        %1939 = vmatprep.subr.mxu0 0.0
        %1940 = vmatpush2.msra.mxu0 0.0
        %1941 = vmatprep.subr.mxu0 0.0
        %1942 = vmatpush2.msra.mxu0 0.0
        %1943 = vmatprep.subr.mxu0 0.0
        %1944 = vmatpush2.msra.mxu0 0.0
        %1945 = vmatprep.subr.mxu0 0.0
        %1946 = vmatpush2.msra.mxu0 0.0
        %1947 = vmatprep.subr.mxu0 0.0
        %1948 = vmatpush2.msra.mxu0 0.0
        %1949 = vmatprep.mubr.f32.mxu0 0.0
        %1950 = vmatmul.mubr.f32.gmra.mxu0 %v1880
        %v1951 = vpop.f32.mrf.mxu0
        %v1952 = vadd.f32 0.0, %v1951
        %v1953 = vpop.f32.mrf.mxu0
        %1954 = vmatprep.mubr.f32.mxu0 0.0
        %1955 = vmatmul.mubr.f32.gmra.mxu0 %v1883
        %v1956 = vpop.f32.mrf.mxu0
        %v1957 = vadd.f32 0.0, %v1956
        %v1958 = vpop.f32.mrf.mxu0
        %1959 = vdwg.mxu0
        %1960 = vmatprep.subr.mxu0 0.0
        %1961 = vmatpush1.msra.mxu0 0.0
        %1962 = vmatprep.subr.mxu0 0.0
        %1963 = vmatpush1.msra.mxu0 0.0
        %1964 = vmatprep.subr.mxu0 0.0
        %1965 = vmatpush1.msra.mxu0 0.0
        %1966 = vmatprep.subr.mxu0 0.0
        %1967 = vmatpush1.msra.mxu0 0.0
        %1968 = vmatprep.subr.mxu0 0.0
        %1969 = vmatpush1.msra.mxu0 0.0
        %1970 = vmatprep.subr.mxu0 0.0
        %1971 = vmatpush1.msra.mxu0 0.0
        %1972 = vmatprep.subr.mxu0 0.0
        %1973 = vmatpush1.msra.mxu0 0.0
        %1974 = vmatprep.subr.mxu0 0.0
        %1975 = vmatpush1.msra.mxu0 0.0
        %1976 = vmatprep.subr.mxu0 0.0
        %1977 = vmatpush1.msra.mxu0 0.0
        %1978 = vmatprep.subr.mxu0 0.0
        %1979 = vmatpush1.msra.mxu0 0.0
        %1980 = vmatprep.subr.mxu0 0.0
        %1981 = vmatpush1.msra.mxu0 0.0
        %1982 = vmatprep.subr.mxu0 0.0
        %1983 = vmatpush1.msra.mxu0 0.0
        %1984 = vmatprep.subr.mxu0 0.0
        %1985 = vmatpush1.msra.mxu0 0.0
        %1986 = vmatprep.subr.mxu0 0.0
        %1987 = vmatpush1.msra.mxu0 0.0
        %1988 = vmatprep.subr.mxu0 0.0
        %1989 = vmatpush1.msra.mxu0 0.0
        %1990 = vmatprep.subr.mxu0 0.0
        %1991 = vmatpush1.msra.mxu0 %v1864
        %1992 = vmatprep.subr.mxu0 0.0
        %1993 = vmatpush2.msra.mxu0 0.0
        %1994 = vmatprep.subr.mxu0 0.0
        %1995 = vmatpush2.msra.mxu0 0.0
        %1996 = vmatprep.subr.mxu0 0.0
        %1997 = vmatpush2.msra.mxu0 0.0
        %1998 = vmatprep.subr.mxu0 0.0
        %1999 = vmatpush2.msra.mxu0 0.0
        %2000 = vmatprep.subr.mxu0 0.0
        %2001 = vmatpush2.msra.mxu0 0.0
        %2002 = vmatprep.subr.mxu0 0.0
        %2003 = vmatpush2.msra.mxu0 0.0
        %2004 = vmatprep.subr.mxu0 0.0
        %2005 = vmatpush2.msra.mxu0 0.0
        %2006 = vmatprep.subr.mxu0 0.0
        %2007 = vmatpush2.msra.mxu0 0.0
        %2008 = vmatprep.subr.mxu0 0.0
        %2009 = vmatpush2.msra.mxu0 0.0
        %2010 = vmatprep.subr.mxu0 0.0
        %2011 = vmatpush2.msra.mxu0 0.0
        %2012 = vmatprep.subr.mxu0 0.0
        %2013 = vmatpush2.msra.mxu0 0.0
        %2014 = vmatprep.subr.mxu0 0.0
        %2015 = vmatpush2.msra.mxu0 0.0
        %2016 = vmatprep.subr.mxu0 0.0
        %2017 = vmatpush2.msra.mxu0 0.0
        %2018 = vmatprep.subr.mxu0 0.0
        %2019 = vmatpush2.msra.mxu0 0.0
        %2020 = vmatprep.subr.mxu0 0.0
        %2021 = vmatpush2.msra.mxu0 0.0
        %2022 = vmatprep.subr.mxu0 0.0
        %2023 = vmatpush2.msra.mxu0 0.0
        %2024 = vmatprep.mubr.f32.mxu0 0.0
        %2025 = vmatmul.mubr.f32.gmra.mxu0 %v1880
        %v2026 = vpop.f32.mrf.mxu0
        %v2027 = vadd.f32 0.0, %v2026
        %v2028 = vpop.f32.mrf.mxu0
        %2029 = vmatprep.mubr.f32.mxu0 0.0
        %2030 = vmatmul.mubr.f32.gmra.mxu0 %v1883
        %v2031 = vpop.f32.mrf.mxu0
        %v2032 = vadd.f32 0.0, %v2031
        %v2033 = vpop.f32.mrf.mxu0
        %2034 = vdwg.mxu0
        %2035 = vmatprep.subr.mxu0 0.0
        %2036 = vmatpush1.msra.mxu0 0.0
        %2037 = vmatprep.subr.mxu0 0.0
        %2038 = vmatpush1.msra.mxu0 0.0
        %2039 = vmatprep.subr.mxu0 0.0
        %2040 = vmatpush1.msra.mxu0 0.0
        %2041 = vmatprep.subr.mxu0 0.0
        %2042 = vmatpush1.msra.mxu0 0.0
        %2043 = vmatprep.subr.mxu0 0.0
        %2044 = vmatpush1.msra.mxu0 0.0
        %2045 = vmatprep.subr.mxu0 0.0
        %2046 = vmatpush1.msra.mxu0 0.0
        %2047 = vmatprep.subr.mxu0 0.0
        %2048 = vmatpush1.msra.mxu0 0.0
        %2049 = vmatprep.subr.mxu0 0.0
        %2050 = vmatpush1.msra.mxu0 0.0
        %2051 = vmatprep.subr.mxu0 0.0
        %2052 = vmatpush1.msra.mxu0 0.0
        %2053 = vmatprep.subr.mxu0 0.0
        %2054 = vmatpush1.msra.mxu0 0.0
        %2055 = vmatprep.subr.mxu0 0.0
        %2056 = vmatpush1.msra.mxu0 0.0
        %2057 = vmatprep.subr.mxu0 0.0
        %2058 = vmatpush1.msra.mxu0 0.0
        %2059 = vmatprep.subr.mxu0 0.0
        %2060 = vmatpush1.msra.mxu0 0.0
        %2061 = vmatprep.subr.mxu0 0.0
        %2062 = vmatpush1.msra.mxu0 0.0
        %2063 = vmatprep.subr.mxu0 0.0
        %2064 = vmatpush1.msra.mxu0 0.0
        %2065 = vmatprep.subr.mxu0 0.0
        %2066 = vmatpush1.msra.mxu0 %v1869
        %2067 = vmatprep.subr.mxu0 0.0
        %2068 = vmatpush2.msra.mxu0 0.0
        %2069 = vmatprep.subr.mxu0 0.0
        %2070 = vmatpush2.msra.mxu0 0.0
        %2071 = vmatprep.subr.mxu0 0.0
        %2072 = vmatpush2.msra.mxu0 0.0
        %2073 = vmatprep.subr.mxu0 0.0
        %2074 = vmatpush2.msra.mxu0 0.0
        %2075 = vmatprep.subr.mxu0 0.0
        %2076 = vmatpush2.msra.mxu0 0.0
        %2077 = vmatprep.subr.mxu0 0.0
        %2078 = vmatpush2.msra.mxu0 0.0
        %2079 = vmatprep.subr.mxu0 0.0
        %2080 = vmatpush2.msra.mxu0 0.0
        %2081 = vmatprep.subr.mxu0 0.0
        %2082 = vmatpush2.msra.mxu0 0.0
        %2083 = vmatprep.subr.mxu0 0.0
        %2084 = vmatpush2.msra.mxu0 0.0
        %2085 = vmatprep.subr.mxu0 0.0
        %2086 = vmatpush2.msra.mxu0 0.0
        %2087 = vmatprep.subr.mxu0 0.0
        %2088 = vmatpush2.msra.mxu0 0.0
        %2089 = vmatprep.subr.mxu0 0.0
        %2090 = vmatpush2.msra.mxu0 0.0
        %2091 = vmatprep.subr.mxu0 0.0
        %2092 = vmatpush2.msra.mxu0 0.0
        %2093 = vmatprep.subr.mxu0 0.0
        %2094 = vmatpush2.msra.mxu0 0.0
        %2095 = vmatprep.subr.mxu0 0.0
        %2096 = vmatpush2.msra.mxu0 0.0
        %2097 = vmatprep.subr.mxu0 0.0
        %2098 = vmatpush2.msra.mxu0 0.0
        %2099 = vmatprep.mubr.f32.mxu0 0.0
        %2100 = vmatmul.mubr.f32.gmra.mxu0 %v1880
        %v2101 = vpop.f32.mrf.mxu0
        %v2102 = vadd.f32 0.0, %v2101
        %v2103 = vpop.f32.mrf.mxu0
        %2104 = vmatprep.mubr.f32.mxu0 0.0
        %2105 = vmatmul.mubr.f32.gmra.mxu0 %v1883
        %v2106 = vpop.f32.mrf.mxu0
        %v2107 = vadd.f32 0.0, %v2106
        %v2108 = vpop.f32.mrf.mxu0
        %2109 = vdwg.mxu0
        %2110 = vmatprep.subr.mxu0 0.0
        %2111 = vmatpush1.msra.mxu0 0.0
        %2112 = vmatprep.subr.mxu0 0.0
        %2113 = vmatpush1.msra.mxu0 0.0
        %2114 = vmatprep.subr.mxu0 0.0
        %2115 = vmatpush1.msra.mxu0 0.0
        %2116 = vmatprep.subr.mxu0 0.0
        %2117 = vmatpush1.msra.mxu0 0.0
        %2118 = vmatprep.subr.mxu0 0.0
        %2119 = vmatpush1.msra.mxu0 0.0
        %2120 = vmatprep.subr.mxu0 0.0
        %2121 = vmatpush1.msra.mxu0 0.0
        %2122 = vmatprep.subr.mxu0 0.0
        %2123 = vmatpush1.msra.mxu0 0.0
        %2124 = vmatprep.subr.mxu0 0.0
        %2125 = vmatpush1.msra.mxu0 0.0
        %2126 = vmatprep.subr.mxu0 0.0
        %2127 = vmatpush1.msra.mxu0 0.0
        %2128 = vmatprep.subr.mxu0 0.0
        %2129 = vmatpush1.msra.mxu0 0.0
        %2130 = vmatprep.subr.mxu0 0.0
        %2131 = vmatpush1.msra.mxu0 0.0
        %2132 = vmatprep.subr.mxu0 0.0
        %2133 = vmatpush1.msra.mxu0 0.0
        %2134 = vmatprep.subr.mxu0 0.0
        %2135 = vmatpush1.msra.mxu0 0.0
        %2136 = vmatprep.subr.mxu0 0.0
        %2137 = vmatpush1.msra.mxu0 0.0
        %2138 = vmatprep.subr.mxu0 0.0
        %2139 = vmatpush1.msra.mxu0 0.0
        %2140 = vmatprep.subr.mxu0 0.0
        %2141 = vmatpush1.msra.mxu0 %v1874
        %2142 = vmatprep.subr.mxu0 0.0
        %2143 = vmatpush2.msra.mxu0 0.0
        %2144 = vmatprep.subr.mxu0 0.0
        %2145 = vmatpush2.msra.mxu0 0.0
        %2146 = vmatprep.subr.mxu0 0.0
        %2147 = vmatpush2.msra.mxu0 0.0
        %2148 = vmatprep.subr.mxu0 0.0
        %2149 = vmatpush2.msra.mxu0 0.0
        %2150 = vmatprep.subr.mxu0 0.0
        %2151 = vmatpush2.msra.mxu0 0.0
        %2152 = vmatprep.subr.mxu0 0.0
        %2153 = vmatpush2.msra.mxu0 0.0
        %2154 = vmatprep.subr.mxu0 0.0
        %2155 = vmatpush2.msra.mxu0 0.0
        %2156 = vmatprep.subr.mxu0 0.0
        %2157 = vmatpush2.msra.mxu0 0.0
        %2158 = vmatprep.subr.mxu0 0.0
        %2159 = vmatpush2.msra.mxu0 0.0
        %2160 = vmatprep.subr.mxu0 0.0
        %2161 = vmatpush2.msra.mxu0 0.0
        %2162 = vmatprep.subr.mxu0 0.0
        %2163 = vmatpush2.msra.mxu0 0.0
        %2164 = vmatprep.subr.mxu0 0.0
        %2165 = vmatpush2.msra.mxu0 0.0
        %2166 = vmatprep.subr.mxu0 0.0
        %2167 = vmatpush2.msra.mxu0 0.0
        %2168 = vmatprep.subr.mxu0 0.0
        %2169 = vmatpush2.msra.mxu0 0.0
        %2170 = vmatprep.subr.mxu0 0.0
        %2171 = vmatpush2.msra.mxu0 0.0
        %2172 = vmatprep.subr.mxu0 0.0
        %2173 = vmatpush2.msra.mxu0 0.0
        %2174 = vmatprep.mubr.f32.mxu0 0.0
        %2175 = vmatmul.mubr.f32.gmra.mxu0 %v1880
        %v2176 = vpop.f32.mrf.mxu0
        %v2177 = vadd.f32 0.0, %v2176
        %v2178 = vpop.f32.mrf.mxu0
        %2179 = vmatprep.mubr.f32.mxu0 0.0
        %2180 = vmatmul.mubr.f32.gmra.mxu0 %v1883
        %v2181 = vpop.f32.mrf.mxu0
        %v2182 = vadd.f32 0.0, %v2181
        %v2183 = vpop.f32.mrf.mxu0
        %2184 = vdwg.mxu0
        %s2185 = sadd.s32 %s1193, 16
        %s2186 = smul.u32 %s2185, 16
        %s2187 = scalar_lea.vmem %s522, %s2186
        %2188 = vst.msk [vmem:[%s2187] sm:$0xff] %vm1196, %v1952
        %2189 = vst.msk [vmem:[%s2187 + $0x8] sm:$0xff] %vm1196, %v1957
        %2190 = vst.msk [vmem:[%s2187 + $0x10] sm:$0xff] %vm1196, %v2027
        %2191 = vst.msk [vmem:[%s2187 + $0x18] sm:$0xff] %vm1196, %v2032
        %2192 = vst.msk [vmem:[%s2187 + $0x20] sm:$0xff] %vm1196, %v2102
        %2193 = vst.msk [vmem:[%s2187 + $0x28] sm:$0xff] %vm1196, %v2107
        %2194 = vst.msk [vmem:[%s2187 + $0x30] sm:$0xff] %vm1196, %v2177
        %2195 = vst.msk [vmem:[%s2187 + $0x38] sm:$0xff] %vm1196, %v2182
        %p2196 = scmp.lt.s32.totalorder %s31, 1
        %s2197 = scalar_select %p2196, %s31, 1
        %s2198 = smul.addr %s2197, 40
        %s2199 = smul.addr %s2198, 8
        %s2200 = scalar_lea.vmem %s10, %s2199
        // Predicated region
        $region73: #{tpu_custom_call.1} parent=59 // pred_check
          %p2201 = pneg %p295
        $region74: #{tpu_custom_call.1} parent=59 // pred_check_branch
          %2203 = sbr.rel (%p2201) target = $region76
        $region75: #{tpu_custom_call.1} parent=59 // pred_region
          _
        $region76: #{tpu_custom_call.1} parent=59 // pred_fallthru
          _
      $region60: #{tpu_custom_call.1} parent=5 // pred_fallthru
        _
      %p2204 = scmp.le.s32.totalorder 2, %s22
      // Predicated region
      $region77: #{tpu_custom_call.1} parent=5 // pred_check
        %p2205 = pneg %p2204
      $region78: #{tpu_custom_call.1} parent=5 // pred_check_branch
        %2207 = sbr.rel (%p2205) target = $region80
      $region79: #{tpu_custom_call.1} parent=5 // pred_region
        %s2208 = ssub.s32 %s22, 2
        // Predicated region
        $region81: #{tpu_custom_call.1} parent=79 // pred_check
          %p2209 = pneg %p301
        $region82: #{tpu_custom_call.1} parent=79 // pred_check_branch
          %2211 = sbr.rel (%p2209) target = $region84
        $region83: #{tpu_custom_call.1} parent=79 // pred_region
          %p2212 = scmp.lt.s32.totalorder %s33, 1
          %s2213 = scalar_select %p2212, %s33, 1
          %s2214 = smul.addr %s2213, 40
          %s2215 = smul.addr %s2214, 8
          %s2216 = scalar_lea.vmem %s10, %s2215
        $region84: #{tpu_custom_call.1} parent=79 // pred_fallthru
          _
      $region80: #{tpu_custom_call.1} parent=5 // pred_fallthru
        _
    $region6: #{tpu_custom_call.1} parent=1 // loop_footer
      %s26 = sadd.s32 1, %s22
    $region7: #{tpu_custom_call.1} parent=1 // loop_footer_branch
      %21 = sbr.rel target = $region3
    $region8: #{tpu_custom_call.1} parent=1 // loop_exit
      _
    %2217 = vsyncpa [#allocation3], 1
    %s2218 = scalar_lea.sflag [#allocation3], 1
    %2219 = vsyncpa %s2218, 1
    %2220 = vsyncpa [#allocation5], 1
    %s2221 = scalar_lea.sflag [#allocation5], 1
    %2222 = vsyncpa %s2221, 1

</llo_original>
